<compile_context>
chip_gen: v7x
topology: tpu7x:2x2x1
jax: 0.10.0
libtpu: 0.0.40
codegen_flags: <defaults>
</compile_context>

<pallas_src>
import functools
import math

import jax
import jax.numpy as jnp
from jax import lax
from jax.experimental import pallas as pl
from jax.experimental.pallas import tpu as pltpu

_LN_EPS = 1e-5       # PyTorch nn.LayerNorm default eps
_NEG_INF = -1e9      # matches masked_fill(mask == 0, -1e9)


# ---------------------------------------------------------------------------
# tiling / VMEM helpers
# ---------------------------------------------------------------------------
def _seq_tile(s: int, target: int = 256) -> int:
    """Sq tile: full sequence if small, else largest multiple-of-8 divisor <= target
    (target ~256 keeps the 256-wide MXU on v6e/v7x full)."""
    if s <= target:
        return s
    for ts in range(target, 7, -8):
        if s % ts == 0:
            return ts
    return s  # fallback: whole sequence resident (fine if it fits VMEM)


def _row_tile(n: int, d: int, target_bytes: int = 2 << 20) -> int:
    """Row tile for flattened (N, D) slabs, targeting ~2 MiB f32 blocks."""
    max_rows = max(8, ((target_bytes // (4 * d)) // 8) * 8)
    return n if n <= max_rows else max_rows


def _ff_tile(d_ff: int, max_tf: int = 2048) -> int:
    """d_ff reduction tile: full if small, else largest multiple-of-128 divisor."""
    if d_ff <= max_tf:
        return d_ff
    for tf in range(max_tf, 127, -128):
        if d_ff % tf == 0:
            return tf
    return d_ff


def _vmem_limit(block_bytes: int) -> int:
    """Explicit scoped-VMEM request: double/triple-buffered blocks + headroom.
    Floor of 32 MiB lifts the v5e 16 MiB scoped default; still below physical
    VMEM on every generation (64 MiB on v7x, 128 MiB on v5e/v6e)."""
    return int(max(3 * block_bytes + (16 << 20), 32 << 20))


# ---------------------------------------------------------------------------
# Kernel 1: fused multi-head attention + residual add + LayerNorm
# ---------------------------------------------------------------------------
def _mha_ln_kernel(q_ref, kv_ref, mask_ref,
                   wq_ref, bq_ref, wk_ref, bk_ref, wv_ref, bv_ref,
                   wo_ref, bo_ref, g_ref, bln_ref, o_ref,
                   *, num_heads, d_k):
    # q_ref: (tq, D)  kv_ref: (Skv, D)  mask_ref: (tq, Skv)
    # w*_ref: (D, D)  b*_ref / g_ref / bln_ref: (1, D)  o_ref: (tq, D)
    x_q = q_ref[...]                      # also the residual for this block
    x_kv = kv_ref[...]

    # QKV projections: full-width (tq, D) x (D, D) MXU calls (never per-head).
    q = jnp.dot(x_q, wq_ref[...], preferred_element_type=jnp.float32) + bq_ref[...]
    k = jnp.dot(x_kv, wk_ref[...], preferred_element_type=jnp.float32) + bk_ref[...]
    v = jnp.dot(x_kv, wv_ref[...], preferred_element_type=jnp.float32) + bv_ref[...]
    q = q * (1.0 / math.sqrt(d_k))        # pre-scale once instead of per-head scores

    # Additive mask bias computed once (hoisted out of the head loop).
    bias = jnp.where(mask_ref[...] == 0.0, jnp.float32(_NEG_INF), jnp.float32(0.0))

    wo = wo_ref[...]
    # Per-head attention, accumulating straight into the W_o projection output
    # (no jnp.concatenate across the lane axis).
    acc = jnp.zeros((x_q.shape[0], wo.shape[1]), jnp.float32)
    for h in range(num_heads):            # static loop over heads
        lo = h * d_k
        qh = q[:, lo:lo + d_k]
        kh = k[:, lo:lo + d_k]
        vh = v[:, lo:lo + d_k]
        # scores = qh @ kh^T (contract last dims; q already scaled) + mask bias
        scores = lax.dot_general(qh, kh, (((1,), (1,)), ((), ())),
                                 preferred_element_type=jnp.float32) + bias
        m = jnp.max(scores, axis=-1, keepdims=True)
        p = jnp.exp(scores - m)
        # single reciprocal per row; approx=True would also be valid but
        # approx=False keeps the 2e-4 check against the f32 reference tight.
        inv = pl.reciprocal(jnp.sum(p, axis=-1, keepdims=True), approx=False)
        # normalise the small (tq, d_k) head output, not the (tq, Skv) probs
        oh = jnp.dot(p, vh, preferred_element_type=jnp.float32) * inv
        acc = acc + jnp.dot(oh, wo[lo:lo + d_k, :],
                            preferred_element_type=jnp.float32)
    attn = acc + bo_ref[...]

    # Fused epilogue: residual add + LayerNorm (dropout = identity, eval mode).
    s = attn + x_q.astype(jnp.float32)
    mu = jnp.mean(s, axis=-1, keepdims=True)
    c = s - mu
    var = jnp.mean(c * c, axis=-1, keepdims=True)
    o_ref[...] = (c * lax.rsqrt(var + _LN_EPS) * g_ref[...]
                  + bln_ref[...]).astype(o_ref.dtype)


def mha_add_layernorm(q_in, kv_in, mask, p, ln, num_heads):
    """LayerNorm(q_in + MHA(q_in, kv_in, kv_in, mask)) as one pallas_call."""
    B, Sq, D = q_in.shape
    Skv = kv_in.shape[1]
    d_k = D // num_heads
    tq = _seq_tile(Sq)
    kernel = functools.partial(_mha_ln_kernel, num_heads=num_heads, d_k=d_k)

    block_bytes = 4 * (3 * tq * D + Skv * D + tq * Skv + 4 * D * D + 6 * D)
    flops = B * (4 * Sq * D * D + 4 * Skv * D * D + 4 * Sq * Skv * D + 10 * Sq * D)
    bytes_acc = 4 * (2 * B * Sq * D + B * Skv * D + B * Sq * Skv + 4 * D * D + 6 * D)

    wmap = lambda b, qi: (0, 0)           # weights / biases / LN params resident
    return pl.pallas_call(
        kernel,
        out_shape=jax.ShapeDtypeStruct((B, Sq, D), q_in.dtype),
        grid=(B, Sq // tq),
        in_specs=[
            pl.BlockSpec((None, tq, D), lambda b, qi: (b, qi, 0)),    # q / residual
            pl.BlockSpec((None, Skv, D), lambda b, qi: (b, 0, 0)),    # k/v source
            pl.BlockSpec((None, tq, Skv), lambda b, qi: (b, qi, 0)),  # mask
            pl.BlockSpec((D, D), wmap), pl.BlockSpec((1, D), wmap),   # W_q, b_q
            pl.BlockSpec((D, D), wmap), pl.BlockSpec((1, D), wmap),   # W_k, b_k
            pl.BlockSpec((D, D), wmap), pl.BlockSpec((1, D), wmap),   # W_v, b_v
            pl.BlockSpec((D, D), wmap), pl.BlockSpec((1, D), wmap),   # W_o, b_o
            pl.BlockSpec((1, D), wmap), pl.BlockSpec((1, D), wmap),   # LN gamma, beta
        ],
        out_specs=pl.BlockSpec((None, tq, D), lambda b, qi: (b, qi, 0)),
        compiler_params=pltpu.CompilerParams(
            dimension_semantics=("parallel", "parallel"),
            vmem_limit_bytes=_vmem_limit(block_bytes)),
        cost_estimate=pl.CostEstimate(
            flops=flops,
            transcendentals=B * num_heads * Sq * (Skv + 1) + B * Sq,
            bytes_accessed=bytes_acc),
    )(q_in, kv_in, mask,
      p["wq"], p["bq"], p["wk"], p["bk"], p["wv"], p["bv"], p["wo"], p["bo"],
      ln["gamma"], ln["beta"])


# ---------------------------------------------------------------------------
# Kernel 2: fused feed-forward (fc2(relu(fc1(x)))) + residual add + LayerNorm
# with a d_ff reduction grid axis so the (rows, d_ff) intermediate and the
# weight slabs stay bounded in VMEM (matters on v7x's 64 MiB VMEM).
# ---------------------------------------------------------------------------
def _ffn_ln_kernel(x_ref, w1_ref, b1_ref, w2_ref, b2_ref, g_ref, bln_ref,
                   o_ref, acc_ref):
    kf = pl.program_id(1)

    @pl.when(kf == 0)
    def _():
        acc_ref[...] = jnp.zeros_like(acc_ref)

    # fc1 slab + ReLU (exact under the d_ff split: columns are independent)
    h = jnp.dot(x_ref[...], w1_ref[...], preferred_element_type=jnp.float32) + b1_ref[...]
    acc_ref[...] += jnp.dot(jnp.maximum(h, 0.0), w2_ref[...],
                            preferred_element_type=jnp.float32)

    @pl.when(kf == pl.num_programs(1) - 1)
    def _():
        # fused epilogue: + b2, residual add, LayerNorm
        s = acc_ref[...] + b2_ref[...] + x_ref[...].astype(jnp.float32)
        mu = jnp.mean(s, axis=-1, keepdims=True)
        c = s - mu
        var = jnp.mean(c * c, axis=-1, keepdims=True)
        o_ref[...] = (c * lax.rsqrt(var + _LN_EPS) * g_ref[...]
                      + bln_ref[...]).astype(o_ref.dtype)


def ffn_add_layernorm(x, p, ln):
    """LayerNorm(x + FFN(x)) as one pallas_call over flattened rows."""
    B, S, D = x.shape
    d_ff = p["w1"].shape[1]
    N = B * S
    ts = _row_tile(N, D)
    tf = _ff_tile(d_ff)

    xf = x.reshape(N, D)
    Np = ((N + ts - 1) // ts) * ts
    if Np != N:  # pad ragged row counts instead of falling back to a full slab
        xf = jnp.concatenate([xf, jnp.zeros((Np - N, D), xf.dtype)], axis=0)

    block_bytes = 4 * (3 * ts * D + 2 * D * tf + tf + 3 * D + ts * tf)
    out = pl.pallas_call(
        _ffn_ln_kernel,
        out_shape=jax.ShapeDtypeStruct((Np, D), x.dtype),
        grid=(Np // ts, d_ff // tf),
        in_specs=[
            pl.BlockSpec((ts, D), lambda i, kf: (i, 0)),    # x (matmul input + residual)
            pl.BlockSpec((D, tf), lambda i, kf: (0, kf)),   # w1 slab
            pl.BlockSpec((1, tf), lambda i, kf: (0, kf)),   # b1 slab
            pl.BlockSpec((tf, D), lambda i, kf: (kf, 0)),   # w2 slab
            pl.BlockSpec((1, D), lambda i, kf: (0, 0)),     # b2
            pl.BlockSpec((1, D), lambda i, kf: (0, 0)),     # LN gamma
            pl.BlockSpec((1, D), lambda i, kf: (0, 0)),     # LN beta
        ],
        out_specs=pl.BlockSpec((ts, D), lambda i, kf: (i, 0)),
        scratch_shapes=[pltpu.VMEM((ts, D), jnp.float32)],
        compiler_params=pltpu.CompilerParams(
            dimension_semantics=("parallel", "arbitrary"),
            vmem_limit_bytes=_vmem_limit(block_bytes)),
        cost_estimate=pl.CostEstimate(
            flops=4 * Np * D * d_ff + 10 * Np * D,
            transcendentals=Np,
            bytes_accessed=4 * (2 * Np * D + 2 * D * d_ff + d_ff + 3 * D)),
    )(xf, p["w1"], p["b1"], p["w2"], p["b2"], ln["gamma"], ln["beta"])
    return out[:N].reshape(B, S, D)


# ---------------------------------------------------------------------------
# DecoderLayer forward
# ---------------------------------------------------------------------------
def decoder_layer_forward(x, enc_out, src_mask, tgt_mask, params, num_heads):
    # TODO(synk): nn.Dropout is identity here (inference / eval mode — no RNG drop).
    x = mha_add_layernorm(x, x, tgt_mask, params["self_attn"], params["norm1"], num_heads)
    x = mha_add_layernorm(x, enc_out, src_mask, params["cross_attn"], params["norm2"], num_heads)
    return ffn_add_layernorm(x, params["ffn"], params["norm3"])


# ---------------------------------------------------------------------------
# Parameter init (weights stored as (in, out) so kernels compute x @ W + b,
# equivalent to PyTorch's x @ W.T + b with its (out, in) storage).
# ---------------------------------------------------------------------------
def init_params(key, d_model, num_heads, d_ff):
    def lin(k, din, dout):
        kw, kb = jax.random.split(k)
        bound = 1.0 / math.sqrt(din)
        w = jax.random.uniform(kw, (din, dout), jnp.float32, -bound, bound)
        b = jax.random.uniform(kb, (1, dout), jnp.float32, -bound, bound)
        return w, b

    def mha_params(k):
        k1, k2, k3, k4 = jax.random.split(k, 4)
        wq, bq = lin(k1, d_model, d_model)
        wk, bk = lin(k2, d_model, d_model)
        wv, bv = lin(k3, d_model, d_model)
        wo, bo = lin(k4, d_model, d_model)
        return dict(wq=wq, bq=bq, wk=wk, bk=bk, wv=wv, bv=bv, wo=wo, bo=bo)

    ks = jax.random.split(key, 4)
    w1, b1 = lin(ks[2], d_model, d_ff)
    w2, b2 = lin(ks[3], d_ff, d_model)
    ln = lambda: dict(gamma=jnp.ones((1, d_model), jnp.float32),
                      beta=jnp.zeros((1, d_model), jnp.float32))
    return dict(self_attn=mha_params(ks[0]), cross_attn=mha_params(ks[1]),
                ffn=dict(w1=w1, b1=b1, w2=w2, b2=b2),
                norm1=ln(), norm2=ln(), norm3=ln())


# ---------------------------------------------------------------------------
# Pure-JAX reference of the same forward (mirrors the PyTorch math)
# ---------------------------------------------------------------------------
def ref_decoder_layer(x, enc_out, src_mask, tgt_mask, params, num_heads):
    def mha(q_in, kv_in, mask, p):
        B, Sq, D = q_in.shape
        dk = D // num_heads
        q = q_in @ p["wq"] + p["bq"]
        k = kv_in @ p["wk"] + p["bk"]
        v = kv_in @ p["wv"] + p["bv"]
        q = q.reshape(B, Sq, num_heads, dk).transpose(0, 2, 1, 3)
        k = k.reshape(B, -1, num_heads, dk).transpose(0, 2, 1, 3)
        v = v.reshape(B, -1, num_heads, dk).transpose(0, 2, 1, 3)
        scores = jnp.einsum("bhqd,bhkd->bhqk", q, k) / math.sqrt(dk)
        scores = jnp.where(mask[:, None, :, :] == 0.0, -1e9, scores)
        probs = jax.nn.softmax(scores, axis=-1)
        attn = jnp.einsum("bhqk,bhkd->bhqd", probs, v)
        attn = attn.transpose(0, 2, 1, 3).reshape(B, Sq, D)
        return attn @ p["wo"] + p["bo"]

    def ln(z, lnp):
        mu = jnp.mean(z, axis=-1, keepdims=True)
        var = jnp.mean((z - mu) ** 2, axis=-1, keepdims=True)
        return (z - mu) / jnp.sqrt(var + _LN_EPS) * lnp["gamma"] + lnp["beta"]

    a = mha(x, x, tgt_mask, params["self_attn"])
    x = ln(x + a, params["norm1"])
    c = mha(x, enc_out, src_mask, params["cross_attn"])
    x = ln(x + c, params["norm2"])
    f = jnp.maximum(x @ params["ffn"]["w1"] + params["ffn"]["b1"], 0.0) @ params["ffn"]["w2"] + params["ffn"]["b2"]
    return ln(x + f, params["norm3"])


if __name__ == "__main__":
    B, S, S_enc = 2, 8, 8
    d_model, num_heads, d_ff = 32, 4, 64

    key = jax.random.PRNGKey(0)
    kx, ke, kp = jax.random.split(key, 3)
    x = jax.random.normal(kx, (B, S, d_model), dtype=jnp.float32)
    enc_out = jax.random.normal(ke, (B, S_enc, d_model), dtype=jnp.float32)

    tgt_mask = jnp.broadcast_to(jnp.tril(jnp.ones((S, S), jnp.float32)), (B, S, S))
    src_mask = jnp.ones((B, S, S_enc), jnp.float32)

    params = init_params(kp, d_model, num_heads, d_ff)

    out = decoder_layer_forward(x, enc_out, src_mask, tgt_mask, params, num_heads)
    out = jax.block_until_ready(out)

    ref = ref_decoder_layer(x, enc_out, src_mask, tgt_mask, params, num_heads)
    assert out.shape == (B, S, d_model)
    err = float(jnp.max(jnp.abs(out - ref)))
    assert jnp.allclose(out, ref, atol=2e-4, rtol=2e-4), f"mismatch vs reference, max abs err {err}"

    print("KERNEL_OK")
</pallas_src>

<mosaic_0001>
module attributes {stable_mosaic.version = 11 : i64} {
  func.func @_mha_ln_kernel(%arg0: i32, %arg1: i32, %arg2: memref<1x8x32xf32, #tpu.memory_space<vmem>>, %arg3: memref<1x8x32xf32, #tpu.memory_space<vmem>>, %arg4: memref<1x8x8xf32, #tpu.memory_space<vmem>>, %arg5: memref<32x32xf32, #tpu.memory_space<vmem>>, %arg6: memref<1x32xf32, #tpu.memory_space<vmem>>, %arg7: memref<32x32xf32, #tpu.memory_space<vmem>>, %arg8: memref<1x32xf32, #tpu.memory_space<vmem>>, %arg9: memref<32x32xf32, #tpu.memory_space<vmem>>, %arg10: memref<1x32xf32, #tpu.memory_space<vmem>>, %arg11: memref<32x32xf32, #tpu.memory_space<vmem>>, %arg12: memref<1x32xf32, #tpu.memory_space<vmem>>, %arg13: memref<1x32xf32, #tpu.memory_space<vmem>>, %arg14: memref<1x32xf32, #tpu.memory_space<vmem>>, %arg15: memref<1x8x32xf32, #tpu.memory_space<vmem>>) attributes {dimension_semantics = [#tpu.dimension_semantics<parallel>, #tpu.dimension_semantics<parallel>], iteration_bounds = array<i64: 2, 1>, scalar_prefetch = 0 : i64, scratch_operands = 0 : i64, tpu.core_type = #tpu.core_type<tc>, window_params = [{transform_indices = @transform_0, window_bounds = array<i64: 1, 8, 32>}, {transform_indices = @transform_1, window_bounds = array<i64: 1, 8, 32>}, {transform_indices = @transform_2, window_bounds = array<i64: 1, 8, 8>}, {pipeline_mode = #tpu.pipeline_mode<synchronous>, transform_indices = @transform_3, window_bounds = array<i64: 32, 32>}, {pipeline_mode = #tpu.pipeline_mode<synchronous>, transform_indices = @transform_4, window_bounds = array<i64: 1, 32>}, {pipeline_mode = #tpu.pipeline_mode<synchronous>, transform_indices = @transform_5, window_bounds = array<i64: 32, 32>}, {pipeline_mode = #tpu.pipeline_mode<synchronous>, transform_indices = @transform_6, window_bounds = array<i64: 1, 32>}, {pipeline_mode = #tpu.pipeline_mode<synchronous>, transform_indices = @transform_7, window_bounds = array<i64: 32, 32>}, {pipeline_mode = #tpu.pipeline_mode<synchronous>, transform_indices = @transform_8, window_bounds = array<i64: 1, 32>}, {pipeline_mode = #tpu.pipeline_mode<synchronous>, transform_indices = @transform_9, window_bounds = array<i64: 32, 32>}, {pipeline_mode = #tpu.pipeline_mode<synchronous>, transform_indices = @transform_10, window_bounds = array<i64: 1, 32>}, {pipeline_mode = #tpu.pipeline_mode<synchronous>, transform_indices = @transform_11, window_bounds = array<i64: 1, 32>}, {pipeline_mode = #tpu.pipeline_mode<synchronous>, transform_indices = @transform_12, window_bounds = array<i64: 1, 32>}, {transform_indices = @transform_13, window_bounds = array<i64: 1, 8, 32>}]} {
    %c0 = arith.constant 0 : index
    %c0_0 = arith.constant 0 : index
    %c0_1 = arith.constant 0 : index
    %0 = vector.load %arg2[%c0, %c0_0, %c0_1] : memref<1x8x32xf32, #tpu.memory_space<vmem>>, vector<1x8x32xf32>
    %1 = vector.shape_cast %0 : vector<1x8x32xf32> to vector<8x32xf32>
    %c0_2 = arith.constant 0 : index
    %c0_3 = arith.constant 0 : index
    %c0_4 = arith.constant 0 : index
    %2 = vector.load %arg3[%c0_2, %c0_3, %c0_4] : memref<1x8x32xf32, #tpu.memory_space<vmem>>, vector<1x8x32xf32>
    %3 = vector.shape_cast %2 : vector<1x8x32xf32> to vector<8x32xf32>
    %c0_5 = arith.constant 0 : index
    %c0_6 = arith.constant 0 : index
    %4 = vector.load %arg5[%c0_5, %c0_6] : memref<32x32xf32, #tpu.memory_space<vmem>>, vector<32x32xf32>
    %cst = arith.constant dense<0.000000e+00> : vector<8x32xf32>
    %5 = tpu.matmul %1, %4, %cst {dimension_numbers = #tpu.dot_dimension_numbers<[1], [0], [0], [1], [0, 0, 1, 1], [], []>} : vector<8x32xf32>, vector<32x32xf32>, vector<8x32xf32> -> vector<8x32xf32>
    %c0_7 = arith.constant 0 : index
    %c0_8 = arith.constant 0 : index
    %6 = vector.load %arg6[%c0_7, %c0_8] : memref<1x32xf32, #tpu.memory_space<vmem>>, vector<1x32xf32>
    %7 = vector.broadcast %6 : vector<1x32xf32> to vector<8x32xf32>
    %8 = arith.addf %5, %7 : vector<8x32xf32>
    %c0_9 = arith.constant 0 : index
    %c0_10 = arith.constant 0 : index
    %9 = vector.load %arg7[%c0_9, %c0_10] : memref<32x32xf32, #tpu.memory_space<vmem>>, vector<32x32xf32>
    %cst_11 = arith.constant dense<0.000000e+00> : vector<8x32xf32>
    %10 = tpu.matmul %3, %9, %cst_11 {dimension_numbers = #tpu.dot_dimension_numbers<[1], [0], [0], [1], [0, 0, 1, 1], [], []>} : vector<8x32xf32>, vector<32x32xf32>, vector<8x32xf32> -> vector<8x32xf32>
    %c0_12 = arith.constant 0 : index
    %c0_13 = arith.constant 0 : index
    %11 = vector.load %arg8[%c0_12, %c0_13] : memref<1x32xf32, #tpu.memory_space<vmem>>, vector<1x32xf32>
    %12 = vector.broadcast %11 : vector<1x32xf32> to vector<8x32xf32>
    %13 = arith.addf %10, %12 : vector<8x32xf32>
    %c0_14 = arith.constant 0 : index
    %c0_15 = arith.constant 0 : index
    %14 = vector.load %arg9[%c0_14, %c0_15] : memref<32x32xf32, #tpu.memory_space<vmem>>, vector<32x32xf32>
    %cst_16 = arith.constant dense<0.000000e+00> : vector<8x32xf32>
    %15 = tpu.matmul %3, %14, %cst_16 {dimension_numbers = #tpu.dot_dimension_numbers<[1], [0], [0], [1], [0, 0, 1, 1], [], []>} : vector<8x32xf32>, vector<32x32xf32>, vector<8x32xf32> -> vector<8x32xf32>
    %c0_17 = arith.constant 0 : index
    %c0_18 = arith.constant 0 : index
    %16 = vector.load %arg10[%c0_17, %c0_18] : memref<1x32xf32, #tpu.memory_space<vmem>>, vector<1x32xf32>
    %17 = vector.broadcast %16 : vector<1x32xf32> to vector<8x32xf32>
    %18 = arith.addf %15, %17 : vector<8x32xf32>
    %cst_19 = arith.constant 0.353553385 : f32
    %19 = vector.broadcast %cst_19 : f32 to vector<8x32xf32>
    %20 = arith.mulf %8, %19 : vector<8x32xf32>
    %c0_20 = arith.constant 0 : index
    %c0_21 = arith.constant 0 : index
    %c0_22 = arith.constant 0 : index
    %21 = vector.load %arg4[%c0_20, %c0_21, %c0_22] : memref<1x8x8xf32, #tpu.memory_space<vmem>>, vector<1x8x8xf32>
    %22 = vector.shape_cast %21 : vector<1x8x8xf32> to vector<8x8xf32>
    %cst_23 = arith.constant 0.000000e+00 : f32
    %23 = vector.broadcast %cst_23 : f32 to vector<8x8xf32>
    %24 = arith.cmpf oeq, %22, %23 : vector<8x8xf32>
    %cst_24 = arith.constant -1.000000e+09 : f32
    %cst_25 = arith.constant 0.000000e+00 : f32
    %25 = vector.broadcast %cst_24 : f32 to vector<8x8xf32>
    %26 = vector.broadcast %cst_25 : f32 to vector<8x8xf32>
    %27 = arith.select %24, %25, %26 : vector<8x8xi1>, vector<8x8xf32>
    %c0_26 = arith.constant 0 : index
    %c0_27 = arith.constant 0 : index
    %28 = vector.load %arg11[%c0_26, %c0_27] : memref<32x32xf32, #tpu.memory_space<vmem>>, vector<32x32xf32>
    %cst_28 = arith.constant 0.000000e+00 : f32
    %29 = vector.broadcast %cst_28 : f32 to vector<8x32xf32>
    %30 = vector.extract_strided_slice %20 {offsets = [0, 0], sizes = [8, 8], strides = [1, 1]} : vector<8x32xf32> to vector<8x8xf32>
    %31 = vector.extract_strided_slice %13 {offsets = [0, 0], sizes = [8, 8], strides = [1, 1]} : vector<8x32xf32> to vector<8x8xf32>
    %32 = vector.extract_strided_slice %18 {offsets = [0, 0], sizes = [8, 8], strides = [1, 1]} : vector<8x32xf32> to vector<8x8xf32>
    %cst_29 = arith.constant dense<0.000000e+00> : vector<8x8xf32>
    %33 = tpu.matmul %30, %31, %cst_29 {dimension_numbers = #tpu.dot_dimension_numbers<[1], [1], [0], [0], [0, 0, 1, 0], [], []>} : vector<8x8xf32>, vector<8x8xf32>, vector<8x8xf32> -> vector<8x8xf32>
    %34 = arith.addf %33, %27 : vector<8x8xf32>
    %cst_30 = arith.constant dense<0xFF800000> : vector<8xf32>
    %35 = vector.multi_reduction <maximumf>, %34, %cst_30 [1] : vector<8x8xf32> to vector<8xf32>
    %36 = vector.shape_cast %35 : vector<8xf32> to vector<8x1xf32>
    %37 = vector.broadcast %36 : vector<8x1xf32> to vector<8x8xf32>
    %38 = arith.subf %34, %37 : vector<8x8xf32>
    %39 = math.exp %38 : vector<8x8xf32>
    %cst_31 = arith.constant dense<0.000000e+00> : vector<8xf32>
    %40 = vector.multi_reduction <add>, %39, %cst_31 [1] : vector<8x8xf32> to vector<8xf32>
    %41 = vector.shape_cast %40 : vector<8xf32> to vector<8x1xf32>
    %42 = tpu.reciprocal %41 : vector<8x1xf32> -> vector<8x1xf32>
    %cst_32 = arith.constant dense<0.000000e+00> : vector<8x8xf32>
    %43 = tpu.matmul %39, %32, %cst_32 {dimension_numbers = #tpu.dot_dimension_numbers<[1], [0], [0], [1], [0, 0, 1, 1], [], []>} : vector<8x8xf32>, vector<8x8xf32>, vector<8x8xf32> -> vector<8x8xf32>
    %44 = vector.broadcast %42 : vector<8x1xf32> to vector<8x8xf32>
    %45 = arith.mulf %43, %44 : vector<8x8xf32>
    %46 = vector.extract_strided_slice %28 {offsets = [0, 0], sizes = [8, 32], strides = [1, 1]} : vector<32x32xf32> to vector<8x32xf32>
    %cst_33 = arith.constant dense<0.000000e+00> : vector<8x32xf32>
    %47 = tpu.matmul %45, %46, %cst_33 {dimension_numbers = #tpu.dot_dimension_numbers<[1], [0], [0], [1], [0, 0, 1, 1], [], []>} : vector<8x8xf32>, vector<8x32xf32>, vector<8x32xf32> -> vector<8x32xf32>
    %48 = arith.addf %29, %47 : vector<8x32xf32>
    %49 = vector.extract_strided_slice %20 {offsets = [0, 8], sizes = [8, 8], strides = [1, 1]} : vector<8x32xf32> to vector<8x8xf32>
    %50 = vector.extract_strided_slice %13 {offsets = [0, 8], sizes = [8, 8], strides = [1, 1]} : vector<8x32xf32> to vector<8x8xf32>
    %51 = vector.extract_strided_slice %18 {offsets = [0, 8], sizes = [8, 8], strides = [1, 1]} : vector<8x32xf32> to vector<8x8xf32>
    %cst_34 = arith.constant dense<0.000000e+00> : vector<8x8xf32>
    %52 = tpu.matmul %49, %50, %cst_34 {dimension_numbers = #tpu.dot_dimension_numbers<[1], [1], [0], [0], [0, 0, 1, 0], [], []>} : vector<8x8xf32>, vector<8x8xf32>, vector<8x8xf32> -> vector<8x8xf32>
    %53 = arith.addf %52, %27 : vector<8x8xf32>
    %cst_35 = arith.constant dense<0xFF800000> : vector<8xf32>
    %54 = vector.multi_reduction <maximumf>, %53, %cst_35 [1] : vector<8x8xf32> to vector<8xf32>
    %55 = vector.shape_cast %54 : vector<8xf32> to vector<8x1xf32>
    %56 = vector.broadcast %55 : vector<8x1xf32> to vector<8x8xf32>
    %57 = arith.subf %53, %56 : vector<8x8xf32>
    %58 = math.exp %57 : vector<8x8xf32>
    %cst_36 = arith.constant dense<0.000000e+00> : vector<8xf32>
    %59 = vector.multi_reduction <add>, %58, %cst_36 [1] : vector<8x8xf32> to vector<8xf32>
    %60 = vector.shape_cast %59 : vector<8xf32> to vector<8x1xf32>
    %61 = tpu.reciprocal %60 : vector<8x1xf32> -> vector<8x1xf32>
    %cst_37 = arith.constant dense<0.000000e+00> : vector<8x8xf32>
    %62 = tpu.matmul %58, %51, %cst_37 {dimension_numbers = #tpu.dot_dimension_numbers<[1], [0], [0], [1], [0, 0, 1, 1], [], []>} : vector<8x8xf32>, vector<8x8xf32>, vector<8x8xf32> -> vector<8x8xf32>
    %63 = vector.broadcast %61 : vector<8x1xf32> to vector<8x8xf32>
    %64 = arith.mulf %62, %63 : vector<8x8xf32>
    %65 = vector.extract_strided_slice %28 {offsets = [8, 0], sizes = [8, 32], strides = [1, 1]} : vector<32x32xf32> to vector<8x32xf32>
    %cst_38 = arith.constant dense<0.000000e+00> : vector<8x32xf32>
    %66 = tpu.matmul %64, %65, %cst_38 {dimension_numbers = #tpu.dot_dimension_numbers<[1], [0], [0], [1], [0, 0, 1, 1], [], []>} : vector<8x8xf32>, vector<8x32xf32>, vector<8x32xf32> -> vector<8x32xf32>
    %67 = arith.addf %48, %66 : vector<8x32xf32>
    %68 = vector.extract_strided_slice %20 {offsets = [0, 16], sizes = [8, 8], strides = [1, 1]} : vector<8x32xf32> to vector<8x8xf32>
    %69 = vector.extract_strided_slice %13 {offsets = [0, 16], sizes = [8, 8], strides = [1, 1]} : vector<8x32xf32> to vector<8x8xf32>
    %70 = vector.extract_strided_slice %18 {offsets = [0, 16], sizes = [8, 8], strides = [1, 1]} : vector<8x32xf32> to vector<8x8xf32>
    %cst_39 = arith.constant dense<0.000000e+00> : vector<8x8xf32>
    %71 = tpu.matmul %68, %69, %cst_39 {dimension_numbers = #tpu.dot_dimension_numbers<[1], [1], [0], [0], [0, 0, 1, 0], [], []>} : vector<8x8xf32>, vector<8x8xf32>, vector<8x8xf32> -> vector<8x8xf32>
    %72 = arith.addf %71, %27 : vector<8x8xf32>
    %cst_40 = arith.constant dense<0xFF800000> : vector<8xf32>
    %73 = vector.multi_reduction <maximumf>, %72, %cst_40 [1] : vector<8x8xf32> to vector<8xf32>
    %74 = vector.shape_cast %73 : vector<8xf32> to vector<8x1xf32>
    %75 = vector.broadcast %74 : vector<8x1xf32> to vector<8x8xf32>
    %76 = arith.subf %72, %75 : vector<8x8xf32>
    %77 = math.exp %76 : vector<8x8xf32>
    %cst_41 = arith.constant dense<0.000000e+00> : vector<8xf32>
    %78 = vector.multi_reduction <add>, %77, %cst_41 [1] : vector<8x8xf32> to vector<8xf32>
    %79 = vector.shape_cast %78 : vector<8xf32> to vector<8x1xf32>
    %80 = tpu.reciprocal %79 : vector<8x1xf32> -> vector<8x1xf32>
    %cst_42 = arith.constant dense<0.000000e+00> : vector<8x8xf32>
    %81 = tpu.matmul %77, %70, %cst_42 {dimension_numbers = #tpu.dot_dimension_numbers<[1], [0], [0], [1], [0, 0, 1, 1], [], []>} : vector<8x8xf32>, vector<8x8xf32>, vector<8x8xf32> -> vector<8x8xf32>
    %82 = vector.broadcast %80 : vector<8x1xf32> to vector<8x8xf32>
    %83 = arith.mulf %81, %82 : vector<8x8xf32>
    %84 = vector.extract_strided_slice %28 {offsets = [16, 0], sizes = [8, 32], strides = [1, 1]} : vector<32x32xf32> to vector<8x32xf32>
    %cst_43 = arith.constant dense<0.000000e+00> : vector<8x32xf32>
    %85 = tpu.matmul %83, %84, %cst_43 {dimension_numbers = #tpu.dot_dimension_numbers<[1], [0], [0], [1], [0, 0, 1, 1], [], []>} : vector<8x8xf32>, vector<8x32xf32>, vector<8x32xf32> -> vector<8x32xf32>
    %86 = arith.addf %67, %85 : vector<8x32xf32>
    %87 = vector.extract_strided_slice %20 {offsets = [0, 24], sizes = [8, 8], strides = [1, 1]} : vector<8x32xf32> to vector<8x8xf32>
    %88 = vector.extract_strided_slice %13 {offsets = [0, 24], sizes = [8, 8], strides = [1, 1]} : vector<8x32xf32> to vector<8x8xf32>
    %89 = vector.extract_strided_slice %18 {offsets = [0, 24], sizes = [8, 8], strides = [1, 1]} : vector<8x32xf32> to vector<8x8xf32>
    %cst_44 = arith.constant dense<0.000000e+00> : vector<8x8xf32>
    %90 = tpu.matmul %87, %88, %cst_44 {dimension_numbers = #tpu.dot_dimension_numbers<[1], [1], [0], [0], [0, 0, 1, 0], [], []>} : vector<8x8xf32>, vector<8x8xf32>, vector<8x8xf32> -> vector<8x8xf32>
    %91 = arith.addf %90, %27 : vector<8x8xf32>
    %cst_45 = arith.constant dense<0xFF800000> : vector<8xf32>
    %92 = vector.multi_reduction <maximumf>, %91, %cst_45 [1] : vector<8x8xf32> to vector<8xf32>
    %93 = vector.shape_cast %92 : vector<8xf32> to vector<8x1xf32>
    %94 = vector.broadcast %93 : vector<8x1xf32> to vector<8x8xf32>
    %95 = arith.subf %91, %94 : vector<8x8xf32>
    %96 = math.exp %95 : vector<8x8xf32>
    %cst_46 = arith.constant dense<0.000000e+00> : vector<8xf32>
    %97 = vector.multi_reduction <add>, %96, %cst_46 [1] : vector<8x8xf32> to vector<8xf32>
    %98 = vector.shape_cast %97 : vector<8xf32> to vector<8x1xf32>
    %99 = tpu.reciprocal %98 : vector<8x1xf32> -> vector<8x1xf32>
    %cst_47 = arith.constant dense<0.000000e+00> : vector<8x8xf32>
    %100 = tpu.matmul %96, %89, %cst_47 {dimension_numbers = #tpu.dot_dimension_numbers<[1], [0], [0], [1], [0, 0, 1, 1], [], []>} : vector<8x8xf32>, vector<8x8xf32>, vector<8x8xf32> -> vector<8x8xf32>
    %101 = vector.broadcast %99 : vector<8x1xf32> to vector<8x8xf32>
    %102 = arith.mulf %100, %101 : vector<8x8xf32>
    %103 = vector.extract_strided_slice %28 {offsets = [24, 0], sizes = [8, 32], strides = [1, 1]} : vector<32x32xf32> to vector<8x32xf32>
    %cst_48 = arith.constant dense<0.000000e+00> : vector<8x32xf32>
    %104 = tpu.matmul %102, %103, %cst_48 {dimension_numbers = #tpu.dot_dimension_numbers<[1], [0], [0], [1], [0, 0, 1, 1], [], []>} : vector<8x8xf32>, vector<8x32xf32>, vector<8x32xf32> -> vector<8x32xf32>
    %105 = arith.addf %86, %104 : vector<8x32xf32>
    %c0_49 = arith.constant 0 : index
    %c0_50 = arith.constant 0 : index
    %106 = vector.load %arg12[%c0_49, %c0_50] : memref<1x32xf32, #tpu.memory_space<vmem>>, vector<1x32xf32>
    %107 = vector.broadcast %106 : vector<1x32xf32> to vector<8x32xf32>
    %108 = arith.addf %105, %107 : vector<8x32xf32>
    %109 = arith.addf %108, %1 : vector<8x32xf32>
    %cst_51 = arith.constant dense<0.000000e+00> : vector<8xf32>
    %110 = vector.multi_reduction <add>, %109, %cst_51 [1] : vector<8x32xf32> to vector<8xf32>
    %111 = vector.shape_cast %110 : vector<8xf32> to vector<8x1xf32>
    %cst_52 = arith.constant 3.200000e+01 : f32
    %112 = vector.broadcast %cst_52 : f32 to vector<8x1xf32>
    %113 = arith.divf %111, %112 : vector<8x1xf32>
    %114 = vector.broadcast %113 : vector<8x1xf32> to vector<8x32xf32>
    %115 = arith.subf %109, %114 : vector<8x32xf32>
    %116 = arith.mulf %115, %115 : vector<8x32xf32>
    %cst_53 = arith.constant dense<0.000000e+00> : vector<8xf32>
    %117 = vector.multi_reduction <add>, %116, %cst_53 [1] : vector<8x32xf32> to vector<8xf32>
    %118 = vector.shape_cast %117 : vector<8xf32> to vector<8x1xf32>
    %cst_54 = arith.constant 3.200000e+01 : f32
    %119 = vector.broadcast %cst_54 : f32 to vector<8x1xf32>
    %120 = arith.divf %118, %119 : vector<8x1xf32>
    %cst_55 = arith.constant 9.99999974E-6 : f32
    %121 = vector.broadcast %cst_55 : f32 to vector<8x1xf32>
    %122 = arith.addf %120, %121 : vector<8x1xf32>
    %123 = math.rsqrt %122 : vector<8x1xf32>
    %124 = vector.broadcast %123 : vector<8x1xf32> to vector<8x32xf32>
    %125 = arith.mulf %115, %124 : vector<8x32xf32>
    %c0_56 = arith.constant 0 : index
    %c0_57 = arith.constant 0 : index
    %126 = vector.load %arg13[%c0_56, %c0_57] : memref<1x32xf32, #tpu.memory_space<vmem>>, vector<1x32xf32>
    %127 = vector.broadcast %126 : vector<1x32xf32> to vector<8x32xf32>
    %128 = arith.mulf %125, %127 : vector<8x32xf32>
    %c0_58 = arith.constant 0 : index
    %c0_59 = arith.constant 0 : index
    %129 = vector.load %arg14[%c0_58, %c0_59] : memref<1x32xf32, #tpu.memory_space<vmem>>, vector<1x32xf32>
    %130 = vector.broadcast %129 : vector<1x32xf32> to vector<8x32xf32>
    %131 = arith.addf %128, %130 : vector<8x32xf32>
    %c0_60 = arith.constant 0 : index
    %c0_61 = arith.constant 0 : index
    %c0_62 = arith.constant 0 : index
    %132 = vector.load %arg15[%c0_60, %c0_61, %c0_62] : memref<1x8x32xf32, #tpu.memory_space<vmem>>, vector<1x8x32xf32>
    %133 = vector.shape_cast %132 : vector<1x8x32xf32> to vector<8x32xf32>
    %134 = vector.shape_cast %131 : vector<8x32xf32> to vector<1x8x32xf32>
    tpu.vector_store %arg15[%c0_60, %c0_61, %c0_62], %134 {strides = array<i32>} : memref<1x8x32xf32, #tpu.memory_space<vmem>>, vector<1x8x32xf32>,
    return
  }
  func.func @transform_0(%arg0: i32, %arg1: i32) -> (i32, i32, i32) {
    %c0_i32 = arith.constant 0 : i32
    %c0_i32_0 = arith.constant 0 : i32
    return %arg0, %arg1, %c0_i32 : i32, i32, i32
  }
  func.func @transform_1(%arg0: i32, %arg1: i32) -> (i32, i32, i32) {
    %c0_i32 = arith.constant 0 : i32
    %c0_i32_0 = arith.constant 0 : i32
    %c0_i32_1 = arith.constant 0 : i32
    return %arg0, %c0_i32, %c0_i32_0 : i32, i32, i32
  }
  func.func @transform_2(%arg0: i32, %arg1: i32) -> (i32, i32, i32) {
    %c0_i32 = arith.constant 0 : i32
    %c0_i32_0 = arith.constant 0 : i32
    return %arg0, %arg1, %c0_i32 : i32, i32, i32
  }
  func.func @transform_3(%arg0: i32, %arg1: i32) -> (i32, i32) {
    %c0_i32 = arith.constant 0 : i32
    %c0_i32_0 = arith.constant 0 : i32
    %c0_i32_1 = arith.constant 0 : i32
    return %c0_i32, %c0_i32_0 : i32, i32
  }
  func.func @transform_4(%arg0: i32, %arg1: i32) -> (i32, i32) {
    %c0_i32 = arith.constant 0 : i32
    %c0_i32_0 = arith.constant 0 : i32
    %c0_i32_1 = arith.constant 0 : i32
    return %c0_i32, %c0_i32_0 : i32, i32
  }
  func.func @transform_5(%arg0: i32, %arg1: i32) -> (i32, i32) {
    %c0_i32 = arith.constant 0 : i32
    %c0_i32_0 = arith.constant 0 : i32
    %c0_i32_1 = arith.constant 0 : i32
    return %c0_i32, %c0_i32_0 : i32, i32
  }
  func.func @transform_6(%arg0: i32, %arg1: i32) -> (i32, i32) {
    %c0_i32 = arith.constant 0 : i32
    %c0_i32_0 = arith.constant 0 : i32
    %c0_i32_1 = arith.constant 0 : i32
    return %c0_i32, %c0_i32_0 : i32, i32
  }
  func.func @transform_7(%arg0: i32, %arg1: i32) -> (i32, i32) {
    %c0_i32 = arith.constant 0 : i32
    %c0_i32_0 = arith.constant 0 : i32
    %c0_i32_1 = arith.constant 0 : i32
    return %c0_i32, %c0_i32_0 : i32, i32
  }
  func.func @transform_8(%arg0: i32, %arg1: i32) -> (i32, i32) {
    %c0_i32 = arith.constant 0 : i32
    %c0_i32_0 = arith.constant 0 : i32
    %c0_i32_1 = arith.constant 0 : i32
    return %c0_i32, %c0_i32_0 : i32, i32
  }
  func.func @transform_9(%arg0: i32, %arg1: i32) -> (i32, i32) {
    %c0_i32 = arith.constant 0 : i32
    %c0_i32_0 = arith.constant 0 : i32
    %c0_i32_1 = arith.constant 0 : i32
    return %c0_i32, %c0_i32_0 : i32, i32
  }
  func.func @transform_10(%arg0: i32, %arg1: i32) -> (i32, i32) {
    %c0_i32 = arith.constant 0 : i32
    %c0_i32_0 = arith.constant 0 : i32
    %c0_i32_1 = arith.constant 0 : i32
    return %c0_i32, %c0_i32_0 : i32, i32
  }
  func.func @transform_11(%arg0: i32, %arg1: i32) -> (i32, i32) {
    %c0_i32 = arith.constant 0 : i32
    %c0_i32_0 = arith.constant 0 : i32
    %c0_i32_1 = arith.constant 0 : i32
    return %c0_i32, %c0_i32_0 : i32, i32
  }
  func.func @transform_12(%arg0: i32, %arg1: i32) -> (i32, i32) {
    %c0_i32 = arith.constant 0 : i32
    %c0_i32_0 = arith.constant 0 : i32
    %c0_i32_1 = arith.constant 0 : i32
    return %c0_i32, %c0_i32_0 : i32, i32
  }
  func.func @transform_13(%arg0: i32, %arg1: i32) -> (i32, i32, i32) {
    %c0_i32 = arith.constant 0 : i32
    %c0_i32_0 = arith.constant 0 : i32
    return %arg0, %arg1, %c0_i32 : i32, i32, i32
  }
}

</mosaic_0001>

<llo_original>
// kernel: tpu_custom_call.1
$region0: #{tpu_custom_call.1}
  #allocation0 [shape = 'u32[]', space=smem, size = 0x4, offset = 0x4, fixed_abs, tag = 'smem constant byte address 0x4 - core index']
  #allocation1 [shape = 'u32[144,128]{1,0:T(1,128)}', space=vmem, size = 0x12000, scoped, tag = 'internal scratch']
  %s0 = inlined_call_operand.hbm [shape: f32[2,8,32], index: 0, kind: input, shape index: {}]
  %s1 = inlined_call_operand.hbm [shape: f32[2,8,32], index: 1, kind: input, shape index: {}]
  %s2 = inlined_call_operand.hbm [shape: f32[2,8,8], index: 2, kind: input, shape index: {}]
  %s3 = inlined_call_operand.hbm [shape: f32[32,32], index: 3, kind: input, shape index: {}]
  %s4 = inlined_call_operand.vmem [shape: f32[1,32], index: 4, kind: input, shape index: {}]
  %s5 = inlined_call_operand.hbm [shape: f32[32,32], index: 5, kind: input, shape index: {}]
  %s6 = inlined_call_operand.vmem [shape: f32[1,32], index: 6, kind: input, shape index: {}]
  %s7 = inlined_call_operand.hbm [shape: f32[32,32], index: 7, kind: input, shape index: {}]
  %s8 = inlined_call_operand.hbm [shape: f32[1,32], index: 8, kind: input, shape index: {}]
  %s9 = inlined_call_operand.vmem [shape: f32[32,32], index: 9, kind: input, shape index: {}]
  %s10 = inlined_call_operand.vmem [shape: f32[1,32], index: 10, kind: input, shape index: {}]
  %s11 = inlined_call_operand.vmem [shape: f32[1,32], index: 11, kind: input, shape index: {}]
  %s12 = inlined_call_operand.vmem [shape: f32[1,32], index: 12, kind: input, shape index: {}]
  %s13 = inlined_call_operand.hbm [shape: f32[2,8,32], index: 13, kind: output, shape index: {}]
  %s14 = sld [smem:[#allocation0]]
  $region113: #{tpu_custom_call.1} parent=0
    _
  %s16 = ssub.s32 1, %s14
  %s17 = scalar_select 0, %s16, %s14
  $region1: #{tpu_custom_call.1} parent=0
    #allocation2 [shape = 'u8[8192]{0}', space=vmem, size = 0x2000, scoped, tag = 'input window, operand 0']
    #allocation3 [shape = 's32[2]{0}', space=sflag, size = 0x8, scoped, tag = 'scoped memory for tpu_custom_call.1']
    #allocation4 [shape = 's32[2]{0}', space=sflag, size = 0x8, scoped, tag = 'scoped memory for tpu_custom_call.1']
    #allocation5 [shape = 'u8[8192]{0}', space=vmem, size = 0x2000, scoped, tag = 'input window, operand 1']
    #allocation6 [shape = 's32[2]{0}', space=sflag, size = 0x8, scoped, tag = 'scoped memory for tpu_custom_call.1']
    #allocation7 [shape = 'u8[8192]{0}', space=vmem, size = 0x2000, scoped, tag = 'input window, operand 2']
    #allocation8 [shape = 'u8[16384]{0}', space=vmem, size = 0x4000, scoped, tag = 'input window, operand 3, single buffered']
    #allocation9 [shape = 's32[1]{0}', space=sflag, size = 0x4, scoped, tag = 'scoped memory for tpu_custom_call.1']
    #allocation10 [shape = 'u8[16384]{0}', space=vmem, size = 0x4000, scoped, tag = 'input window, operand 5, single buffered']
    #allocation11 [shape = 'u8[16384]{0}', space=vmem, size = 0x4000, scoped, tag = 'input window, operand 7, single buffered']
    #allocation12 [shape = 's32[1]{0}', space=sflag, size = 0x4, scoped, tag = 'scoped memory for tpu_custom_call.1']
    #allocation13 [shape = 'u8[512]{0}', space=vmem, size = 0x400, scoped, tag = 'input window, operand 8, single buffered']
    #allocation14 [shape = 'u8[8192]{0}', space=vmem, size = 0x2000, scoped, tag = 'output window, operand 0']
    %18 = vsyncpa [#allocation3], 0
    %s19 = scalar_lea.sflag [#allocation3], 1
    %20 = vsyncpa %s19, 0
    %21 = vsyncpa [#allocation6], 0
    %s22 = scalar_lea.sflag [#allocation6], 1
    %23 = vsyncpa %s22, 0
    %24 = vsyncpa [#allocation9], 0
    %25 = vsyncpa [#allocation12], 0
    %26 = vsyncpa [#allocation4], 0
    %s27 = scalar_lea.sflag [#allocation4], 1
    %28 = vsyncpa %s27, 0
    loop: start=0, step=1, limit=4
    $region2: #{tpu_custom_call.1} parent=1 // loop_pre_header
      _
    $region3: #{tpu_custom_call.1} parent=1 // loop_header
      %s30 = sphi 0, %s34
      %p31 = scmp.ge.s32.totalorder %s30, 4
      %s37 = sphi 0, %s49
      %s38 = sphi 0, %s45
      %s39 = sphi 0, %s37
      %s40 = sphi 0, %s38
      %s41 = sphi 0, %s39
      %s42 = sphi 0, %s40
      %s54 = sphi 0, %s56
      %s57 = sphi 0, %s54
      %s58 = sphi 0, %s57
      %s74 = sphi 0, %s58
      %s80 = sphi 0, %s82
      %s83 = sphi 0, %s80
      %s84 = sphi 0, %s83
      %s100 = sphi 0, %s84
      %s108 = sphi 0, %s110
      %s111 = sphi 0, %s108
      %s112 = sphi 0, %s111
      %s128 = sphi 0, %s112
      %s132 = sphi 0, %s132
      %s134 = sphi 0, %s132
      %s135 = sphi 0, %s134
      %s149 = sphi 0, %s135
      %s153 = sphi 0, %s153
      %s155 = sphi 0, %s153
      %s156 = sphi 0, %s155
      %s170 = sphi 0, %s156
      %s174 = sphi 0, %s174
      %s176 = sphi 0, %s174
      %s177 = sphi 0, %s176
      %s191 = sphi 0, %s177
      %s195 = sphi 0, %s195
      %s197 = sphi 0, %s195
      %s198 = sphi 0, %s197
      %s212 = sphi 0, %s198
      %s216 = sphi 0, %s216
      %s218 = sphi 0, %s216
      %s219 = sphi 0, %s218
      %s233 = sphi 0, %s219
      %s237 = sphi 0, %s237
      %s239 = sphi 0, %s237
      %s240 = sphi 0, %s239
      %s254 = sphi 0, %s240
      %s258 = sphi 0, %s258
      %s260 = sphi 0, %s258
      %s261 = sphi 0, %s260
      %s275 = sphi 0, %s261
      %s279 = sphi 0, %s279
      %s281 = sphi 0, %s279
      %s282 = sphi 0, %s281
      %s296 = sphi 0, %s282
      %s300 = sphi 0, %s300
      %s302 = sphi 0, %s300
      %s303 = sphi 0, %s302
      %s317 = sphi 0, %s303
      %s321 = sphi 0, %s321
      %s323 = sphi 0, %s321
      %s324 = sphi 0, %s323
      %s338 = sphi 0, %s324
      %s346 = sphi 0, %s348
      %s349 = sphi 0, %s346
      %s350 = sphi 0, %s349
      %s366 = sphi 0, %s350
    $region4: #{tpu_custom_call.1} parent=1 // loop_header_branch
      %33 = sbr.rel (%p31) target = $region8
    $region5: #{tpu_custom_call.1} parent=1 // loop_body
      %s35 = ssub.s32 %s30, 1
      %s36 = ssub.s32 %s30, 2
      %s43 = sadd.s32 1, %s38
      %p44 = scmp.ge.s32.totalorder %s43, 1
      %s45 = scalar_select %p44, 0, %s43
      %s46 = sadd.s32 1, %s37
      %s47 = scalar_select %p44, %s46, %s37
      %p48 = scmp.ge.s32.totalorder %s47, 2
      %s49 = scalar_select %p48, 0, %s47
      %s50 = ssub.s32 %s37, %s49
      %s51 = ssub.s32 %s38, %s45
      %s52 = sor.u32 %s50, %s51
      %p53 = scmp.eq.s32.totalorder %s52, 0
      %s55 = sadd.s32 %s54, 1
      %s56 = scalar_select %p53, %s54, %s55
      %p59 = pneg %p53
      %p60 = scmp.eq.s32.totalorder %s30, 1
      %p61 = por %p59, %p60
      %p62 = scmp.ne.s32.totalorder %s54, %s57
      %p63 = scmp.eq.s32.totalorder %s30, 0
      %p64 = por %p62, %p63
      %p65 = scmp.ne.s32.totalorder %s54, %s57
      %p66 = scmp.eq.s32.totalorder %s35, 1
      %p67 = por %p65, %p66
      %p68 = scmp.ne.s32.totalorder %s57, %s58
      %p69 = scmp.eq.s32.totalorder %s35, 0
      %p70 = por %p68, %p69
      %p71 = scmp.ne.s32.totalorder %s57, %s58
      %p72 = scmp.eq.s32.totalorder %s36, 1
      %p73 = por %p71, %p72
      %p75 = scmp.ne.s32.totalorder %s58, %s74
      %p76 = scmp.eq.s32.totalorder %s36, 0
      %p77 = por %p75, %p76
      %s78 = ssub.s32 %s37, %s49
      %p79 = scmp.eq.s32.totalorder %s78, 0
      %s81 = sadd.s32 %s80, 1
      %s82 = scalar_select %p79, %s80, %s81
      %p85 = pneg %p79
      %p86 = scmp.eq.s32.totalorder %s30, 1
      %p87 = por %p85, %p86
      %p88 = scmp.ne.s32.totalorder %s80, %s83
      %p89 = scmp.eq.s32.totalorder %s30, 0
      %p90 = por %p88, %p89
      %p91 = scmp.ne.s32.totalorder %s80, %s83
      %p92 = scmp.eq.s32.totalorder %s35, 1
      %p93 = por %p91, %p92
      %p94 = scmp.ne.s32.totalorder %s83, %s84
      %p95 = scmp.eq.s32.totalorder %s35, 0
      %p96 = por %p94, %p95
      %p97 = scmp.ne.s32.totalorder %s83, %s84
      %p98 = scmp.eq.s32.totalorder %s36, 1
      %p99 = por %p97, %p98
      %p101 = scmp.ne.s32.totalorder %s84, %s100
      %p102 = scmp.eq.s32.totalorder %s36, 0
      %p103 = por %p101, %p102
      %s104 = ssub.s32 %s37, %s49
      %s105 = ssub.s32 %s38, %s45
      %s106 = sor.u32 %s104, %s105
      %p107 = scmp.eq.s32.totalorder %s106, 0
      %s109 = sadd.s32 %s108, 1
      %s110 = scalar_select %p107, %s108, %s109
      %p113 = pneg %p107
      %p114 = scmp.eq.s32.totalorder %s30, 1
      %p115 = por %p113, %p114
      %p116 = scmp.ne.s32.totalorder %s108, %s111
      %p117 = scmp.eq.s32.totalorder %s30, 0
      %p118 = por %p116, %p117
      %p119 = scmp.ne.s32.totalorder %s108, %s111
      %p120 = scmp.eq.s32.totalorder %s35, 1
      %p121 = por %p119, %p120
      %p122 = scmp.ne.s32.totalorder %s111, %s112
      %p123 = scmp.eq.s32.totalorder %s35, 0
      %p124 = por %p122, %p123
      %p125 = scmp.ne.s32.totalorder %s111, %s112
      %p126 = scmp.eq.s32.totalorder %s36, 1
      %p127 = por %p125, %p126
      %p129 = scmp.ne.s32.totalorder %s112, %s128
      %p130 = scmp.eq.s32.totalorder %s36, 0
      %p131 = por %p129, %p130
      %s133 = sadd.s32 %s132, 1
      %p136 = scmp.eq.s32.totalorder %s30, 1
      %p137 = scmp.ne.s32.totalorder %s132, %s134
      %p138 = scmp.eq.s32.totalorder %s30, 0
      %p139 = por %p137, %p138
      %p140 = scmp.ne.s32.totalorder %s132, %s134
      %p141 = scmp.eq.s32.totalorder %s35, 1
      %p142 = por %p140, %p141
      %p143 = scmp.ne.s32.totalorder %s134, %s135
      %p144 = scmp.eq.s32.totalorder %s35, 0
      %p145 = por %p143, %p144
      %p146 = scmp.ne.s32.totalorder %s134, %s135
      %p147 = scmp.eq.s32.totalorder %s36, 1
      %p148 = por %p146, %p147
      %p150 = scmp.ne.s32.totalorder %s135, %s149
      %p151 = scmp.eq.s32.totalorder %s36, 0
      %p152 = por %p150, %p151
      %s154 = sadd.s32 %s153, 1
      %p157 = scmp.eq.s32.totalorder %s30, 1
      %p158 = scmp.ne.s32.totalorder %s153, %s155
      %p159 = scmp.eq.s32.totalorder %s30, 0
      %p160 = por %p158, %p159
      %p161 = scmp.ne.s32.totalorder %s153, %s155
      %p162 = scmp.eq.s32.totalorder %s35, 1
      %p163 = por %p161, %p162
      %p164 = scmp.ne.s32.totalorder %s155, %s156
      %p165 = scmp.eq.s32.totalorder %s35, 0
      %p166 = por %p164, %p165
      %p167 = scmp.ne.s32.totalorder %s155, %s156
      %p168 = scmp.eq.s32.totalorder %s36, 1
      %p169 = por %p167, %p168
      %p171 = scmp.ne.s32.totalorder %s156, %s170
      %p172 = scmp.eq.s32.totalorder %s36, 0
      %p173 = por %p171, %p172
      %s175 = sadd.s32 %s174, 1
      %p178 = scmp.eq.s32.totalorder %s30, 1
      %p179 = scmp.ne.s32.totalorder %s174, %s176
      %p180 = scmp.eq.s32.totalorder %s30, 0
      %p181 = por %p179, %p180
      %p182 = scmp.ne.s32.totalorder %s174, %s176
      %p183 = scmp.eq.s32.totalorder %s35, 1
      %p184 = por %p182, %p183
      %p185 = scmp.ne.s32.totalorder %s176, %s177
      %p186 = scmp.eq.s32.totalorder %s35, 0
      %p187 = por %p185, %p186
      %p188 = scmp.ne.s32.totalorder %s176, %s177
      %p189 = scmp.eq.s32.totalorder %s36, 1
      %p190 = por %p188, %p189
      %p192 = scmp.ne.s32.totalorder %s177, %s191
      %p193 = scmp.eq.s32.totalorder %s36, 0
      %p194 = por %p192, %p193
      %s196 = sadd.s32 %s195, 1
      %p199 = scmp.eq.s32.totalorder %s30, 1
      %p200 = scmp.ne.s32.totalorder %s195, %s197
      %p201 = scmp.eq.s32.totalorder %s30, 0
      %p202 = por %p200, %p201
      %p203 = scmp.ne.s32.totalorder %s195, %s197
      %p204 = scmp.eq.s32.totalorder %s35, 1
      %p205 = por %p203, %p204
      %p206 = scmp.ne.s32.totalorder %s197, %s198
      %p207 = scmp.eq.s32.totalorder %s35, 0
      %p208 = por %p206, %p207
      %p209 = scmp.ne.s32.totalorder %s197, %s198
      %p210 = scmp.eq.s32.totalorder %s36, 1
      %p211 = por %p209, %p210
      %p213 = scmp.ne.s32.totalorder %s198, %s212
      %p214 = scmp.eq.s32.totalorder %s36, 0
      %p215 = por %p213, %p214
      %s217 = sadd.s32 %s216, 1
      %p220 = scmp.eq.s32.totalorder %s30, 1
      %p221 = scmp.ne.s32.totalorder %s216, %s218
      %p222 = scmp.eq.s32.totalorder %s30, 0
      %p223 = por %p221, %p222
      %p224 = scmp.ne.s32.totalorder %s216, %s218
      %p225 = scmp.eq.s32.totalorder %s35, 1
      %p226 = por %p224, %p225
      %p227 = scmp.ne.s32.totalorder %s218, %s219
      %p228 = scmp.eq.s32.totalorder %s35, 0
      %p229 = por %p227, %p228
      %p230 = scmp.ne.s32.totalorder %s218, %s219
      %p231 = scmp.eq.s32.totalorder %s36, 1
      %p232 = por %p230, %p231
      %p234 = scmp.ne.s32.totalorder %s219, %s233
      %p235 = scmp.eq.s32.totalorder %s36, 0
      %p236 = por %p234, %p235
      %s238 = sadd.s32 %s237, 1
      %p241 = scmp.eq.s32.totalorder %s30, 1
      %p242 = scmp.ne.s32.totalorder %s237, %s239
      %p243 = scmp.eq.s32.totalorder %s30, 0
      %p244 = por %p242, %p243
      %p245 = scmp.ne.s32.totalorder %s237, %s239
      %p246 = scmp.eq.s32.totalorder %s35, 1
      %p247 = por %p245, %p246
      %p248 = scmp.ne.s32.totalorder %s239, %s240
      %p249 = scmp.eq.s32.totalorder %s35, 0
      %p250 = por %p248, %p249
      %p251 = scmp.ne.s32.totalorder %s239, %s240
      %p252 = scmp.eq.s32.totalorder %s36, 1
      %p253 = por %p251, %p252
      %p255 = scmp.ne.s32.totalorder %s240, %s254
      %p256 = scmp.eq.s32.totalorder %s36, 0
      %p257 = por %p255, %p256
      %s259 = sadd.s32 %s258, 1
      %p262 = scmp.eq.s32.totalorder %s30, 1
      %p263 = scmp.ne.s32.totalorder %s258, %s260
      %p264 = scmp.eq.s32.totalorder %s30, 0
      %p265 = por %p263, %p264
      %p266 = scmp.ne.s32.totalorder %s258, %s260
      %p267 = scmp.eq.s32.totalorder %s35, 1
      %p268 = por %p266, %p267
      %p269 = scmp.ne.s32.totalorder %s260, %s261
      %p270 = scmp.eq.s32.totalorder %s35, 0
      %p271 = por %p269, %p270
      %p272 = scmp.ne.s32.totalorder %s260, %s261
      %p273 = scmp.eq.s32.totalorder %s36, 1
      %p274 = por %p272, %p273
      %p276 = scmp.ne.s32.totalorder %s261, %s275
      %p277 = scmp.eq.s32.totalorder %s36, 0
      %p278 = por %p276, %p277
      %s280 = sadd.s32 %s279, 1
      %p283 = scmp.eq.s32.totalorder %s30, 1
      %p284 = scmp.ne.s32.totalorder %s279, %s281
      %p285 = scmp.eq.s32.totalorder %s30, 0
      %p286 = por %p284, %p285
      %p287 = scmp.ne.s32.totalorder %s279, %s281
      %p288 = scmp.eq.s32.totalorder %s35, 1
      %p289 = por %p287, %p288
      %p290 = scmp.ne.s32.totalorder %s281, %s282
      %p291 = scmp.eq.s32.totalorder %s35, 0
      %p292 = por %p290, %p291
      %p293 = scmp.ne.s32.totalorder %s281, %s282
      %p294 = scmp.eq.s32.totalorder %s36, 1
      %p295 = por %p293, %p294
      %p297 = scmp.ne.s32.totalorder %s282, %s296
      %p298 = scmp.eq.s32.totalorder %s36, 0
      %p299 = por %p297, %p298
      %s301 = sadd.s32 %s300, 1
      %p304 = scmp.eq.s32.totalorder %s30, 1
      %p305 = scmp.ne.s32.totalorder %s300, %s302
      %p306 = scmp.eq.s32.totalorder %s30, 0
      %p307 = por %p305, %p306
      %p308 = scmp.ne.s32.totalorder %s300, %s302
      %p309 = scmp.eq.s32.totalorder %s35, 1
      %p310 = por %p308, %p309
      %p311 = scmp.ne.s32.totalorder %s302, %s303
      %p312 = scmp.eq.s32.totalorder %s35, 0
      %p313 = por %p311, %p312
      %p314 = scmp.ne.s32.totalorder %s302, %s303
      %p315 = scmp.eq.s32.totalorder %s36, 1
      %p316 = por %p314, %p315
      %p318 = scmp.ne.s32.totalorder %s303, %s317
      %p319 = scmp.eq.s32.totalorder %s36, 0
      %p320 = por %p318, %p319
      %s322 = sadd.s32 %s321, 1
      %p325 = scmp.eq.s32.totalorder %s30, 1
      %p326 = scmp.ne.s32.totalorder %s321, %s323
      %p327 = scmp.eq.s32.totalorder %s30, 0
      %p328 = por %p326, %p327
      %p329 = scmp.ne.s32.totalorder %s321, %s323
      %p330 = scmp.eq.s32.totalorder %s35, 1
      %p331 = por %p329, %p330
      %p332 = scmp.ne.s32.totalorder %s323, %s324
      %p333 = scmp.eq.s32.totalorder %s35, 0
      %p334 = por %p332, %p333
      %p335 = scmp.ne.s32.totalorder %s323, %s324
      %p336 = scmp.eq.s32.totalorder %s36, 1
      %p337 = por %p335, %p336
      %p339 = scmp.ne.s32.totalorder %s324, %s338
      %p340 = scmp.eq.s32.totalorder %s36, 0
      %p341 = por %p339, %p340
      %s342 = ssub.s32 %s37, %s49
      %s343 = ssub.s32 %s38, %s45
      %s344 = sor.u32 %s342, %s343
      %p345 = scmp.eq.s32.totalorder %s344, 0
      %s347 = sadd.s32 %s346, 1
      %s348 = scalar_select %p345, %s346, %s347
      %p351 = pneg %p345
      %p352 = scmp.eq.s32.totalorder %s30, 1
      %p353 = por %p351, %p352
      %p354 = scmp.ne.s32.totalorder %s346, %s349
      %p355 = scmp.eq.s32.totalorder %s30, 0
      %p356 = por %p354, %p355
      %p357 = scmp.ne.s32.totalorder %s346, %s349
      %p358 = scmp.eq.s32.totalorder %s35, 1
      %p359 = por %p357, %p358
      %p360 = scmp.ne.s32.totalorder %s349, %s350
      %p361 = scmp.eq.s32.totalorder %s35, 0
      %p362 = por %p360, %p361
      %p363 = scmp.ne.s32.totalorder %s349, %s350
      %p364 = scmp.eq.s32.totalorder %s36, 1
      %p365 = por %p363, %p364
      %p367 = scmp.ne.s32.totalorder %s350, %s366
      %p368 = scmp.eq.s32.totalorder %s36, 0
      %p369 = por %p367, %p368
      %p370 = scmp.le.s32.totalorder 1, %s30
      %p371 = scmp.lt.s32.totalorder %s30, 3
      %p372 = pnand %p370, %p371
      %p373 = pneg %p372
      // Predicated region
      $region9: #{tpu_custom_call.1} parent=5 // pred_check
        _
      $region10: #{tpu_custom_call.1} parent=5 // pred_check_branch
        %375 = sbr.rel (%p372) target = $region12
      $region11: #{tpu_custom_call.1} parent=5 // pred_region
        %s376 = ssub.s32 %s30, 1
        // Predicated region
        $region13: #{tpu_custom_call.1} parent=11 // pred_check
          %p377 = pneg %p145
        $region14: #{tpu_custom_call.1} parent=11 // pred_check_branch
          %379 = sbr.rel (%p377) target = $region16
        $region15: #{tpu_custom_call.1} parent=11 // pred_region
          %s381 = ssub.s32 512, 512
          %382 = vsyncadd [#allocation9], %s381
          %s383 = sshll.u32 [#allocation8], 4
          %s384 = int_to_ptr.vmem [resolvable:$true] %s383
          %389 = dma.hbm_to_vmem [thread:$0]  %s3, 512, %s384, [#allocation9], 128, 128, 8
        $region16: #{tpu_custom_call.1} parent=11 // pred_fallthru
          _
        // Predicated region
        $region17: #{tpu_custom_call.1} parent=11 // pred_check
          %p390 = pneg %p166
        $region18: #{tpu_custom_call.1} parent=11 // pred_check_branch
          %392 = sbr.rel (%p390) target = $region20
        $region19: #{tpu_custom_call.1} parent=11 // pred_region
          _
        $region20: #{tpu_custom_call.1} parent=11 // pred_fallthru
          _
        // Predicated region
        $region21: #{tpu_custom_call.1} parent=11 // pred_check
          %p393 = pneg %p187
        $region22: #{tpu_custom_call.1} parent=11 // pred_check_branch
          %395 = sbr.rel (%p393) target = $region24
        $region23: #{tpu_custom_call.1} parent=11 // pred_region
          %s397 = ssub.s32 512, 512
          %398 = vsyncadd [#allocation9], %s397
          %s399 = sshll.u32 [#allocation10], 4
          %s400 = int_to_ptr.vmem [resolvable:$true] %s399
          %405 = dma.hbm_to_vmem [thread:$0]  %s5, 512, %s400, [#allocation9], 128, 128, 8
        $region24: #{tpu_custom_call.1} parent=11 // pred_fallthru
          _
        // Predicated region
        $region25: #{tpu_custom_call.1} parent=11 // pred_check
          %p406 = pneg %p208
        $region26: #{tpu_custom_call.1} parent=11 // pred_check_branch
          %408 = sbr.rel (%p406) target = $region28
        $region27: #{tpu_custom_call.1} parent=11 // pred_region
          _
        $region28: #{tpu_custom_call.1} parent=11 // pred_fallthru
          _
        // Predicated region
        $region29: #{tpu_custom_call.1} parent=11 // pred_check
          %p409 = pneg %p229
        $region30: #{tpu_custom_call.1} parent=11 // pred_check_branch
          %411 = sbr.rel (%p409) target = $region32
        $region31: #{tpu_custom_call.1} parent=11 // pred_region
          %s413 = ssub.s32 512, 512
          %414 = vsyncadd [#allocation12], %s413
          %s415 = sshll.u32 [#allocation11], 4
          %s416 = int_to_ptr.vmem [resolvable:$true] %s415
          %421 = dma.hbm_to_vmem [thread:$0]  %s7, 512, %s416, [#allocation12], 128, 128, 8
        $region32: #{tpu_custom_call.1} parent=11 // pred_fallthru
          _
        // Predicated region
        $region33: #{tpu_custom_call.1} parent=11 // pred_check
          %p422 = pneg %p250
        $region34: #{tpu_custom_call.1} parent=11 // pred_check_branch
          %424 = sbr.rel (%p422) target = $region36
        $region35: #{tpu_custom_call.1} parent=11 // pred_region
          %s426 = ssub.s32 16, 16
          %427 = vsyncadd [#allocation12], %s426
          %s429 = sshll.u32 [#allocation13], 4
          %s430 = int_to_ptr.vmem [resolvable:$true] %s429
          %432 = dma.hbm_to_vmem [thread:$0]  %s8, 16, %s430, [#allocation12]
        $region36: #{tpu_custom_call.1} parent=11 // pred_fallthru
          _
        // Predicated region
        $region37: #{tpu_custom_call.1} parent=11 // pred_check
          %p433 = pneg %p271
        $region38: #{tpu_custom_call.1} parent=11 // pred_check_branch
          %435 = sbr.rel (%p433) target = $region40
        $region39: #{tpu_custom_call.1} parent=11 // pred_region
          _
        $region40: #{tpu_custom_call.1} parent=11 // pred_fallthru
          _
        // Predicated region
        $region41: #{tpu_custom_call.1} parent=11 // pred_check
          %p436 = pneg %p292
        $region42: #{tpu_custom_call.1} parent=11 // pred_check_branch
          %438 = sbr.rel (%p436) target = $region44
        $region43: #{tpu_custom_call.1} parent=11 // pred_region
          _
        $region44: #{tpu_custom_call.1} parent=11 // pred_fallthru
          _
        // Predicated region
        $region45: #{tpu_custom_call.1} parent=11 // pred_check
          %p439 = pneg %p313
        $region46: #{tpu_custom_call.1} parent=11 // pred_check_branch
          %441 = sbr.rel (%p439) target = $region48
        $region47: #{tpu_custom_call.1} parent=11 // pred_region
          _
        $region48: #{tpu_custom_call.1} parent=11 // pred_fallthru
          _
        // Predicated region
        $region49: #{tpu_custom_call.1} parent=11 // pred_check
          %p442 = pneg %p334
        $region50: #{tpu_custom_call.1} parent=11 // pred_check_branch
          %444 = sbr.rel (%p442) target = $region52
        $region51: #{tpu_custom_call.1} parent=11 // pred_region
          _
        $region52: #{tpu_custom_call.1} parent=11 // pred_fallthru
          _
      $region12: #{tpu_custom_call.1} parent=5 // pred_fallthru
        _
      %p445 = scmp.lt.s32.totalorder %s30, 2
      // Predicated region
      $region53: #{tpu_custom_call.1} parent=5 // pred_check
        %p446 = pneg %p445
      $region54: #{tpu_custom_call.1} parent=5 // pred_check_branch
        %448 = sbr.rel (%p446) target = $region56
      $region55: #{tpu_custom_call.1} parent=5 // pred_region
        // Predicated region
        $region57: #{tpu_custom_call.1} parent=55 // pred_check
          %p449 = pneg %p64
        $region58: #{tpu_custom_call.1} parent=55 // pred_check_branch
          %451 = sbr.rel (%p449) target = $region60
        $region59: #{tpu_custom_call.1} parent=55 // pred_region
          %s452 = sand.u32 %s54, 1
          %s453 = scalar_lea.sflag [#allocation3], %s452
          %s454 = sand.u32 %s54, 1
          %s455 = smul.addr %s454, 8
          %s456 = scalar_lea.vmem [#allocation2], %s455
          %s458 = ssub.s32 128, 128
          %459 = vsyncadd %s453, %s458
          %s460 = sadd.s32 %s38, %s37
          %s461 = smul.addr %s460, 128
          %s462 = scalar_lea.hbm %s0, %s461
          %s464 = sshll.u32 %s456, 4
          %s465 = int_to_ptr.vmem [resolvable:$true] %s464
          %467 = dma.hbm_to_vmem [thread:$0]  %s462, 128, %s465, %s453
        $region60: #{tpu_custom_call.1} parent=55 // pred_fallthru
          _
        // Predicated region
        $region61: #{tpu_custom_call.1} parent=55 // pred_check
          %p468 = pneg %p90
        $region62: #{tpu_custom_call.1} parent=55 // pred_check_branch
          %470 = sbr.rel (%p468) target = $region64
        $region63: #{tpu_custom_call.1} parent=55 // pred_region
          %s471 = sand.u32 %s30, 1
          %s472 = scalar_lea.sflag [#allocation6], %s471
          %s473 = sand.u32 %s80, 1
          %s474 = smul.addr %s473, 8
          %s475 = scalar_lea.vmem [#allocation5], %s474
          %s477 = ssub.s32 128, 128
          %478 = vsyncadd %s472, %s477
          %s479 = smul.addr %s37, 128
          %s480 = scalar_lea.hbm %s1, %s479
          %s482 = sshll.u32 %s475, 4
          %s483 = int_to_ptr.vmem [resolvable:$true] %s482
          %485 = dma.hbm_to_vmem [thread:$0]  %s480, 128, %s483, %s472
        $region64: #{tpu_custom_call.1} parent=55 // pred_fallthru
          _
        // Predicated region
        $region65: #{tpu_custom_call.1} parent=55 // pred_check
          %p486 = pneg %p118
        $region66: #{tpu_custom_call.1} parent=55 // pred_check_branch
          %488 = sbr.rel (%p486) target = $region68
        $region67: #{tpu_custom_call.1} parent=55 // pred_region
          %s489 = sand.u32 %s30, 1
          %s490 = scalar_lea.sflag [#allocation6], %s489
          %s491 = sand.u32 %s108, 1
          %s492 = smul.addr %s491, 8
          %s493 = scalar_lea.vmem [#allocation7], %s492
          %s495 = ssub.s32 128, 128
          %496 = vsyncadd %s490, %s495
          %s497 = sadd.s32 %s38, %s37
          %s498 = smul.addr %s497, 128
          %s499 = scalar_lea.hbm %s2, %s498
          %s501 = sshll.u32 %s493, 4
          %s502 = int_to_ptr.vmem [resolvable:$true] %s501
          %504 = dma.hbm_to_vmem [thread:$0]  %s499, 128, %s502, %s490
        $region68: #{tpu_custom_call.1} parent=55 // pred_fallthru
          _
      $region56: #{tpu_custom_call.1} parent=5 // pred_fallthru
        _
      %p505 = scmp.le.s32.totalorder 1, %s30
      %p506 = scmp.lt.s32.totalorder %s30, 3
      %p507 = pnand %p505, %p506
      %p508 = pneg %p507
      // Predicated region
      $region69: #{tpu_custom_call.1} parent=5 // pred_check
        _
      $region70: #{tpu_custom_call.1} parent=5 // pred_check_branch
        %510 = sbr.rel (%p507) target = $region72
      $region71: #{tpu_custom_call.1} parent=5 // pred_region
        %s511 = ssub.s32 %s30, 1
        %s512 = sand.u32 %s57, 1
        %s513 = scalar_lea.sflag [#allocation3], %s512
        %s514 = sand.u32 %s57, 1
        %s515 = smul.addr %s514, 8
        %s516 = scalar_lea.vmem [#allocation2], %s515
        // Predicated region
        $region73: #{tpu_custom_call.1} parent=71 // pred_check
          %p517 = pneg %p70
        $region74: #{tpu_custom_call.1} parent=71 // pred_check_branch
          %519 = sbr.rel (%p517) target = $region76
        $region75: #{tpu_custom_call.1} parent=71 // pred_region
          %520 = dma.done %s513, 128
        $region76: #{tpu_custom_call.1} parent=71 // pred_fallthru
          _
        %s521 = sand.u32 %s35, 1
        %s522 = scalar_lea.sflag [#allocation6], %s521
        %s523 = sand.u32 %s83, 1
        %s524 = smul.addr %s523, 8
        %s525 = scalar_lea.vmem [#allocation5], %s524
        // Predicated region
        $region77: #{tpu_custom_call.1} parent=71 // pred_check
          %p526 = pneg %p96
        $region78: #{tpu_custom_call.1} parent=71 // pred_check_branch
          %528 = sbr.rel (%p526) target = $region80
        $region79: #{tpu_custom_call.1} parent=71 // pred_region
          %529 = dma.done %s522, 128
        $region80: #{tpu_custom_call.1} parent=71 // pred_fallthru
          _
        %s530 = sand.u32 %s35, 1
        %s531 = scalar_lea.sflag [#allocation6], %s530
        %s532 = sand.u32 %s111, 1
        %s533 = smul.addr %s532, 8
        %s534 = scalar_lea.vmem [#allocation7], %s533
        // Predicated region
        $region81: #{tpu_custom_call.1} parent=71 // pred_check
          %p535 = pneg %p124
        $region82: #{tpu_custom_call.1} parent=71 // pred_check_branch
          %537 = sbr.rel (%p535) target = $region84
        $region83: #{tpu_custom_call.1} parent=71 // pred_region
          %538 = dma.done %s531, 128
        $region84: #{tpu_custom_call.1} parent=71 // pred_fallthru
          _
        // Predicated region
        $region85: #{tpu_custom_call.1} parent=71 // pred_check
          %p539 = pneg %p145
        $region86: #{tpu_custom_call.1} parent=71 // pred_check_branch
          %541 = sbr.rel (%p539) target = $region88
        $region87: #{tpu_custom_call.1} parent=71 // pred_region
          %542 = dma.done [#allocation9], 512
        $region88: #{tpu_custom_call.1} parent=71 // pred_fallthru
          _
        // Predicated region
        $region89: #{tpu_custom_call.1} parent=71 // pred_check
          %p543 = pneg %p187
        $region90: #{tpu_custom_call.1} parent=71 // pred_check_branch
          %545 = sbr.rel (%p543) target = $region92
        $region91: #{tpu_custom_call.1} parent=71 // pred_region
          %546 = dma.done [#allocation9], 512
        $region92: #{tpu_custom_call.1} parent=71 // pred_fallthru
          _
        // Predicated region
        $region93: #{tpu_custom_call.1} parent=71 // pred_check
          %p547 = pneg %p229
        $region94: #{tpu_custom_call.1} parent=71 // pred_check_branch
          %549 = sbr.rel (%p547) target = $region96
        $region95: #{tpu_custom_call.1} parent=71 // pred_region
          %550 = dma.done [#allocation12], 512
        $region96: #{tpu_custom_call.1} parent=71 // pred_fallthru
          _
        // Predicated region
        $region97: #{tpu_custom_call.1} parent=71 // pred_check
          %p551 = pneg %p250
        $region98: #{tpu_custom_call.1} parent=71 // pred_check_branch
          %553 = sbr.rel (%p551) target = $region100
        $region99: #{tpu_custom_call.1} parent=71 // pred_region
          %554 = dma.done [#allocation12], 16
        $region100: #{tpu_custom_call.1} parent=71 // pred_fallthru
          _
        %s555 = sand.u32 %s57, 1
        %s556 = scalar_lea.sflag [#allocation3], %s555
        %s557 = sand.u32 %s57, 1
        %s558 = smul.addr %s557, 8
        %s559 = scalar_lea.vmem [#allocation2], %s558
        %p560 = pneg %p70
        %p561 = pneg %p67
        %s562 = sand.u32 %s35, 1
        %s563 = scalar_lea.sflag [#allocation6], %s562
        %s564 = sand.u32 %s83, 1
        %s565 = smul.addr %s564, 8
        %s566 = scalar_lea.vmem [#allocation5], %s565
        %p567 = pneg %p96
        %p568 = pneg %p93
        %s569 = sand.u32 %s35, 1
        %s570 = scalar_lea.sflag [#allocation6], %s569
        %s571 = sand.u32 %s111, 1
        %s572 = smul.addr %s571, 8
        %s573 = scalar_lea.vmem [#allocation7], %s572
        %p574 = pneg %p124
        %p575 = pneg %p121
        %p576 = pneg %p145
        %p577 = pneg %p142
        %p578 = pneg %p166
        %p579 = pneg %p163
        %p580 = pneg %p187
        %p581 = pneg %p184
        %p582 = pneg %p208
        %p583 = pneg %p205
        %p584 = pneg %p229
        %p585 = pneg %p226
        %p586 = pneg %p250
        %p587 = pneg %p247
        %p588 = pneg %p271
        %p589 = pneg %p268
        %p590 = pneg %p292
        %p591 = pneg %p289
        %p592 = pneg %p313
        %p593 = pneg %p310
        %p594 = pneg %p334
        %p595 = pneg %p331
        %p596 = pneg %p362
        %p597 = pneg %p359
        %s598 = sand.u32 %s349, 1
        %s599 = scalar_lea.sflag [#allocation4], %s598
        %s600 = sand.u32 %s349, 1
        %s601 = smul.addr %s600, 8
        %s602 = scalar_lea.vmem [#allocation14], %s601
        %v603 = vld [vmem:[%s516] sm:$0xff]
        %v604 = vld [vmem:[%s525] sm:$0xff]
        %v605 = vld [vmem:[#allocation8] sm:$0xff]
        %v606 = vld [vmem:[#allocation8 + $0x8] sm:$0xff]
        %v607 = vld [vmem:[#allocation8 + $0x10] sm:$0xff]
        %v608 = vld [vmem:[#allocation8 + $0x18] sm:$0xff]
        %v609 = vld [vmem:[%s4] sm:$0x1]
        %v611 = vlaneseq
        %v612 = vshrl.u32 %v611, 7
        %v613 = vsub.s32 0, %v612
        %v614 = vrot.slane %v609, %v613
        %vm616 = vcmask 261120
        %v618 = vsel %vm616, %v603, 0
        %620 = vmatprep.subr.mxu0 0.0
        %621 = vmatpush1.msra.mxu0 %v605
        %622 = vmatprep.subr.mxu0 0.0
        %623 = vmatpush1.msra.mxu0 %v606
        %624 = vmatprep.subr.mxu0 0.0
        %625 = vmatpush1.msra.mxu0 %v607
        %626 = vmatprep.subr.mxu0 0.0
        %627 = vmatpush1.msra.mxu0 %v608
        %628 = vmatprep.subr.mxu0 0.0
        %629 = vmatpush1.msra.mxu0 0.0
        %630 = vmatprep.subr.mxu0 0.0
        %631 = vmatpush1.msra.mxu0 0.0
        %632 = vmatprep.subr.mxu0 0.0
        %633 = vmatpush1.msra.mxu0 0.0
        %634 = vmatprep.subr.mxu0 0.0
        %635 = vmatpush1.msra.mxu0 0.0
        %636 = vmatprep.subr.mxu0 0.0
        %637 = vmatpush1.msra.mxu0 0.0
        %638 = vmatprep.subr.mxu0 0.0
        %639 = vmatpush1.msra.mxu0 0.0
        %640 = vmatprep.subr.mxu0 0.0
        %641 = vmatpush1.msra.mxu0 0.0
        %642 = vmatprep.subr.mxu0 0.0
        %643 = vmatpush1.msra.mxu0 0.0
        %644 = vmatprep.subr.mxu0 0.0
        %645 = vmatpush1.msra.mxu0 0.0
        %646 = vmatprep.subr.mxu0 0.0
        %647 = vmatpush1.msra.mxu0 0.0
        %648 = vmatprep.subr.mxu0 0.0
        %649 = vmatpush1.msra.mxu0 0.0
        %650 = vmatprep.subr.mxu0 0.0
        %651 = vmatpush1.msra.mxu0 0.0
        %652 = vmatprep.subr.mxu0 0.0
        %653 = vmatpush1.msra.mxu0 0.0
        %654 = vmatprep.subr.mxu0 0.0
        %655 = vmatpush1.msra.mxu0 0.0
        %656 = vmatprep.subr.mxu0 0.0
        %657 = vmatpush1.msra.mxu0 0.0
        %658 = vmatprep.subr.mxu0 0.0
        %659 = vmatpush1.msra.mxu0 0.0
        %660 = vmatprep.subr.mxu0 0.0
        %661 = vmatpush1.msra.mxu0 0.0
        %662 = vmatprep.subr.mxu0 0.0
        %663 = vmatpush1.msra.mxu0 0.0
        %664 = vmatprep.subr.mxu0 0.0
        %665 = vmatpush1.msra.mxu0 0.0
        %666 = vmatprep.subr.mxu0 0.0
        %667 = vmatpush1.msra.mxu0 0.0
        %668 = vmatprep.subr.mxu0 0.0
        %669 = vmatpush1.msra.mxu0 0.0
        %670 = vmatprep.subr.mxu0 0.0
        %671 = vmatpush1.msra.mxu0 0.0
        %672 = vmatprep.subr.mxu0 0.0
        %673 = vmatpush1.msra.mxu0 0.0
        %674 = vmatprep.subr.mxu0 0.0
        %675 = vmatpush1.msra.mxu0 0.0
        %676 = vmatprep.subr.mxu0 0.0
        %677 = vmatpush1.msra.mxu0 0.0
        %678 = vmatprep.subr.mxu0 0.0
        %679 = vmatpush1.msra.mxu0 0.0
        %680 = vmatprep.subr.mxu0 0.0
        %681 = vmatpush1.msra.mxu0 0.0
        %682 = vmatprep.subr.mxu0 0.0
        %683 = vmatpush1.msra.mxu0 0.0
        %684 = vmatprep.mubr.f32.mxu0 0.0
        %685 = vmatmul.mubr.f32.gmra.mrb[0].mxu0 %v618
        %v686 = vpop.f32.mrb[0].mxu0
        %v687 = vadd.f32 %v614, %v686
        %v688 = vpop.f32.mrb[0].mxu0
        %689 = vdwg.mxu0
        %v690 = vld [vmem:[#allocation10] sm:$0xff]
        %v691 = vld [vmem:[#allocation10 + $0x8] sm:$0xff]
        %v692 = vld [vmem:[#allocation10 + $0x10] sm:$0xff]
        %v693 = vld [vmem:[#allocation10 + $0x18] sm:$0xff]
        %v694 = vld [vmem:[%s6] sm:$0x1]
        %v696 = vlaneseq
        %v697 = vshrl.u32 %v696, 7
        %v698 = vsub.s32 0, %v697
        %v699 = vrot.slane %v694, %v698
        %v702 = vsel %vm616, %v604, 0
        %704 = vmatprep.subr.mxu0 0.0
        %705 = vmatpush1.msra.mxu0 %v690
        %706 = vmatprep.subr.mxu0 0.0
        %707 = vmatpush1.msra.mxu0 %v691
        %708 = vmatprep.subr.mxu0 0.0
        %709 = vmatpush1.msra.mxu0 %v692
        %710 = vmatprep.subr.mxu0 0.0
        %711 = vmatpush1.msra.mxu0 %v693
        %712 = vmatprep.subr.mxu0 0.0
        %713 = vmatpush1.msra.mxu0 0.0
        %714 = vmatprep.subr.mxu0 0.0
        %715 = vmatpush1.msra.mxu0 0.0
        %716 = vmatprep.subr.mxu0 0.0
        %717 = vmatpush1.msra.mxu0 0.0
        %718 = vmatprep.subr.mxu0 0.0
        %719 = vmatpush1.msra.mxu0 0.0
        %720 = vmatprep.subr.mxu0 0.0
        %721 = vmatpush1.msra.mxu0 0.0
        %722 = vmatprep.subr.mxu0 0.0
        %723 = vmatpush1.msra.mxu0 0.0
        %724 = vmatprep.subr.mxu0 0.0
        %725 = vmatpush1.msra.mxu0 0.0
        %726 = vmatprep.subr.mxu0 0.0
        %727 = vmatpush1.msra.mxu0 0.0
        %728 = vmatprep.subr.mxu0 0.0
        %729 = vmatpush1.msra.mxu0 0.0
        %730 = vmatprep.subr.mxu0 0.0
        %731 = vmatpush1.msra.mxu0 0.0
        %732 = vmatprep.subr.mxu0 0.0
        %733 = vmatpush1.msra.mxu0 0.0
        %734 = vmatprep.subr.mxu0 0.0
        %735 = vmatpush1.msra.mxu0 0.0
        %736 = vmatprep.subr.mxu0 0.0
        %737 = vmatpush1.msra.mxu0 0.0
        %738 = vmatprep.subr.mxu0 0.0
        %739 = vmatpush1.msra.mxu0 0.0
        %740 = vmatprep.subr.mxu0 0.0
        %741 = vmatpush1.msra.mxu0 0.0
        %742 = vmatprep.subr.mxu0 0.0
        %743 = vmatpush1.msra.mxu0 0.0
        %744 = vmatprep.subr.mxu0 0.0
        %745 = vmatpush1.msra.mxu0 0.0
        %746 = vmatprep.subr.mxu0 0.0
        %747 = vmatpush1.msra.mxu0 0.0
        %748 = vmatprep.subr.mxu0 0.0
        %749 = vmatpush1.msra.mxu0 0.0
        %750 = vmatprep.subr.mxu0 0.0
        %751 = vmatpush1.msra.mxu0 0.0
        %752 = vmatprep.subr.mxu0 0.0
        %753 = vmatpush1.msra.mxu0 0.0
        %754 = vmatprep.subr.mxu0 0.0
        %755 = vmatpush1.msra.mxu0 0.0
        %756 = vmatprep.subr.mxu0 0.0
        %757 = vmatpush1.msra.mxu0 0.0
        %758 = vmatprep.subr.mxu0 0.0
        %759 = vmatpush1.msra.mxu0 0.0
        %760 = vmatprep.subr.mxu0 0.0
        %761 = vmatpush1.msra.mxu0 0.0
        %762 = vmatprep.subr.mxu0 0.0
        %763 = vmatpush1.msra.mxu0 0.0
        %764 = vmatprep.subr.mxu0 0.0
        %765 = vmatpush1.msra.mxu0 0.0
        %766 = vmatprep.subr.mxu0 0.0
        %767 = vmatpush1.msra.mxu0 0.0
        %768 = vmatprep.mubr.f32.mxu0 0.0
        %769 = vmatmul.mubr.f32.gmra.mrb[0].mxu0 %v702
        %v770 = vpop.f32.mrb[0].mxu0
        %v771 = vadd.f32 %v699, %v770
        %v772 = vpop.f32.mrb[0].mxu0
        %773 = vdwg.mxu0
        %v774 = vld [vmem:[#allocation11] sm:$0xff]
        %v775 = vld [vmem:[#allocation11 + $0x8] sm:$0xff]
        %v776 = vld [vmem:[#allocation11 + $0x10] sm:$0xff]
        %v777 = vld [vmem:[#allocation11 + $0x18] sm:$0xff]
        %v778 = vld [vmem:[#allocation13] sm:$0x1]
        %v780 = vlaneseq
        %v781 = vshrl.u32 %v780, 7
        %v782 = vsub.s32 0, %v781
        %v783 = vrot.slane %v778, %v782
        %785 = vmatprep.subr.mxu0 0.0
        %786 = vmatpush1.msra.mxu0 %v774
        %787 = vmatprep.subr.mxu0 0.0
        %788 = vmatpush1.msra.mxu0 %v775
        %789 = vmatprep.subr.mxu0 0.0
        %790 = vmatpush1.msra.mxu0 %v776
        %791 = vmatprep.subr.mxu0 0.0
        %792 = vmatpush1.msra.mxu0 %v777
        %793 = vmatprep.subr.mxu0 0.0
        %794 = vmatpush1.msra.mxu0 0.0
        %795 = vmatprep.subr.mxu0 0.0
        %796 = vmatpush1.msra.mxu0 0.0
        %797 = vmatprep.subr.mxu0 0.0
        %798 = vmatpush1.msra.mxu0 0.0
        %799 = vmatprep.subr.mxu0 0.0
        %800 = vmatpush1.msra.mxu0 0.0
        %801 = vmatprep.subr.mxu0 0.0
        %802 = vmatpush1.msra.mxu0 0.0
        %803 = vmatprep.subr.mxu0 0.0
        %804 = vmatpush1.msra.mxu0 0.0
        %805 = vmatprep.subr.mxu0 0.0
        %806 = vmatpush1.msra.mxu0 0.0
        %807 = vmatprep.subr.mxu0 0.0
        %808 = vmatpush1.msra.mxu0 0.0
        %809 = vmatprep.subr.mxu0 0.0
        %810 = vmatpush1.msra.mxu0 0.0
        %811 = vmatprep.subr.mxu0 0.0
        %812 = vmatpush1.msra.mxu0 0.0
        %813 = vmatprep.subr.mxu0 0.0
        %814 = vmatpush1.msra.mxu0 0.0
        %815 = vmatprep.subr.mxu0 0.0
        %816 = vmatpush1.msra.mxu0 0.0
        %817 = vmatprep.subr.mxu0 0.0
        %818 = vmatpush1.msra.mxu0 0.0
        %819 = vmatprep.subr.mxu0 0.0
        %820 = vmatpush1.msra.mxu0 0.0
        %821 = vmatprep.subr.mxu0 0.0
        %822 = vmatpush1.msra.mxu0 0.0
        %823 = vmatprep.subr.mxu0 0.0
        %824 = vmatpush1.msra.mxu0 0.0
        %825 = vmatprep.subr.mxu0 0.0
        %826 = vmatpush1.msra.mxu0 0.0
        %827 = vmatprep.subr.mxu0 0.0
        %828 = vmatpush1.msra.mxu0 0.0
        %829 = vmatprep.subr.mxu0 0.0
        %830 = vmatpush1.msra.mxu0 0.0
        %831 = vmatprep.subr.mxu0 0.0
        %832 = vmatpush1.msra.mxu0 0.0
        %833 = vmatprep.subr.mxu0 0.0
        %834 = vmatpush1.msra.mxu0 0.0
        %835 = vmatprep.subr.mxu0 0.0
        %836 = vmatpush1.msra.mxu0 0.0
        %837 = vmatprep.subr.mxu0 0.0
        %838 = vmatpush1.msra.mxu0 0.0
        %839 = vmatprep.subr.mxu0 0.0
        %840 = vmatpush1.msra.mxu0 0.0
        %841 = vmatprep.subr.mxu0 0.0
        %842 = vmatpush1.msra.mxu0 0.0
        %843 = vmatprep.subr.mxu0 0.0
        %844 = vmatpush1.msra.mxu0 0.0
        %845 = vmatprep.subr.mxu0 0.0
        %846 = vmatpush1.msra.mxu0 0.0
        %847 = vmatprep.subr.mxu0 0.0
        %848 = vmatpush1.msra.mxu0 0.0
        %849 = vmatprep.mubr.f32.mxu0 0.0
        %850 = vmatmul.mubr.f32.gmra.mrb[0].mxu0 %v702
        %v851 = vpop.f32.mrb[0].mxu0
        %v852 = vadd.f32 %v783, %v851
        %v853 = vpop.f32.mrb[0].mxu0
        %854 = vdwg.mxu0
        %v855 = vmul.f32 %v687, 0.35355338
        %v856 = vld [vmem:[%s534] sm:$0xff]
        %vm857 = vcmp.eq.f32.partialorder %v856, 0.0
        %v858 = vsel %vm857, -1e+09, 0.0
        %v859 = vld [vmem:[%s9] sm:$0xff]
        %v860 = vld [vmem:[%s9 + $0x8] sm:$0xff]
        %v861 = vld [vmem:[%s9 + $0x10] sm:$0xff]
        %v862 = vld [vmem:[%s9 + $0x18] sm:$0xff]
        %vm863 = vcmask 64512
        %v865 = vsel %vm863, %v855, 0
        %v868 = vsel %vm863, %v771, 0
        %870 = vmatprep.subr.mxu0 0.0
        %871 = vmatpush1.xpose.msra.mxu0 %v868
        %872 = vmatprep.subr.mxu0 0.0
        %873 = vmatpush1.xpose.msra.mxu0 0.0
        %874 = vmatprep.subr.mxu0 0.0
        %875 = vmatpush1.xpose.msra.mxu0 0.0
        %876 = vmatprep.subr.mxu0 0.0
        %877 = vmatpush1.xpose.msra.mxu0 0.0
        %878 = vmatprep.subr.mxu0 0.0
        %879 = vmatpush1.xpose.msra.mxu0 0.0
        %880 = vmatprep.subr.mxu0 0.0
        %881 = vmatpush1.xpose.msra.mxu0 0.0
        %882 = vmatprep.subr.mxu0 0.0
        %883 = vmatpush1.xpose.msra.mxu0 0.0
        %884 = vmatprep.subr.mxu0 0.0
        %885 = vmatpush1.xpose.msra.mxu0 0.0
        %886 = vmatprep.subr.mxu0 0.0
        %887 = vmatpush1.xpose.msra.mxu0 0.0
        %888 = vmatprep.subr.mxu0 0.0
        %889 = vmatpush1.xpose.msra.mxu0 0.0
        %890 = vmatprep.subr.mxu0 0.0
        %891 = vmatpush1.xpose.msra.mxu0 0.0
        %892 = vmatprep.subr.mxu0 0.0
        %893 = vmatpush1.xpose.msra.mxu0 0.0
        %894 = vmatprep.subr.mxu0 0.0
        %895 = vmatpush1.xpose.msra.mxu0 0.0
        %896 = vmatprep.subr.mxu0 0.0
        %897 = vmatpush1.xpose.msra.mxu0 0.0
        %898 = vmatprep.subr.mxu0 0.0
        %899 = vmatpush1.xpose.msra.mxu0 0.0
        %900 = vmatprep.subr.mxu0 0.0
        %901 = vmatpush1.xpose.msra.mxu0 0.0
        %902 = vmatprep.subr.mxu0 0.0
        %903 = vmatpush1.xpose.msra.mxu0 0.0
        %904 = vmatprep.subr.mxu0 0.0
        %905 = vmatpush1.xpose.msra.mxu0 0.0
        %906 = vmatprep.subr.mxu0 0.0
        %907 = vmatpush1.xpose.msra.mxu0 0.0
        %908 = vmatprep.subr.mxu0 0.0
        %909 = vmatpush1.xpose.msra.mxu0 0.0
        %910 = vmatprep.subr.mxu0 0.0
        %911 = vmatpush1.xpose.msra.mxu0 0.0
        %912 = vmatprep.subr.mxu0 0.0
        %913 = vmatpush1.xpose.msra.mxu0 0.0
        %914 = vmatprep.subr.mxu0 0.0
        %915 = vmatpush1.xpose.msra.mxu0 0.0
        %916 = vmatprep.subr.mxu0 0.0
        %917 = vmatpush1.xpose.msra.mxu0 0.0
        %918 = vmatprep.subr.mxu0 0.0
        %919 = vmatpush1.xpose.msra.mxu0 0.0
        %920 = vmatprep.subr.mxu0 0.0
        %921 = vmatpush1.xpose.msra.mxu0 0.0
        %922 = vmatprep.subr.mxu0 0.0
        %923 = vmatpush1.xpose.msra.mxu0 0.0
        %924 = vmatprep.subr.mxu0 0.0
        %925 = vmatpush1.xpose.msra.mxu0 0.0
        %926 = vmatprep.subr.mxu0 0.0
        %927 = vmatpush1.xpose.msra.mxu0 0.0
        %928 = vmatprep.subr.mxu0 0.0
        %929 = vmatpush1.xpose.msra.mxu0 0.0
        %930 = vmatprep.subr.mxu0 0.0
        %931 = vmatpush1.xpose.msra.mxu0 0.0
        %932 = vmatprep.subr.mxu0 0.0
        %933 = vmatpush1.xpose.msra.mxu0 0.0
        %934 = vmatprep.mubr.f32.mxu0 0.0
        %935 = vmatmul.mubr.f32.gmra.mrb[0].mxu0 %v865
        %v936 = vpop.f32.mrb[0].mxu0
        %v937 = vadd.f32 %v858, %v936
        %v938 = vpop.f32.mrb[0].mxu0
        %939 = vdwg.mxu0
        %v940 = vsel %vm863, %v937, -inf
        %941 = vmax.xlane.f32.xlu0 %v940
        %v942 = vpop.xlane.xlu0 %941
        %v943 = vsub.f32 %v937, %v942
        %v944 = vmul.f32 %v943, 1.442695
        %v945 = vpow.pop %v944
        %v946 = vsel %vm863, %v945, 0.0
        %947 = vadd.xlane.f32.xlu0 %v946
        %v948 = vpop.xlane.xlu0 %947
        %v949 = vrcp.pop %v948
        %v951 = vsel %vm863, %v945, 0
        %953 = vmatprep.subr.mxu0 0.0
        %954 = vmatpush1.msra.mxu0 %v852
        %955 = vmatprep.subr.mxu0 0.0
        %956 = vmatpush1.msra.mxu0 0.0
        %957 = vmatprep.subr.mxu0 0.0
        %958 = vmatpush1.msra.mxu0 0.0
        %959 = vmatprep.subr.mxu0 0.0
        %960 = vmatpush1.msra.mxu0 0.0
        %961 = vmatprep.subr.mxu0 0.0
        %962 = vmatpush1.msra.mxu0 0.0
        %963 = vmatprep.subr.mxu0 0.0
        %964 = vmatpush1.msra.mxu0 0.0
        %965 = vmatprep.subr.mxu0 0.0
        %966 = vmatpush1.msra.mxu0 0.0
        %967 = vmatprep.subr.mxu0 0.0
        %968 = vmatpush1.msra.mxu0 0.0
        %969 = vmatprep.subr.mxu0 0.0
        %970 = vmatpush1.msra.mxu0 0.0
        %971 = vmatprep.subr.mxu0 0.0
        %972 = vmatpush1.msra.mxu0 0.0
        %973 = vmatprep.subr.mxu0 0.0
        %974 = vmatpush1.msra.mxu0 0.0
        %975 = vmatprep.subr.mxu0 0.0
        %976 = vmatpush1.msra.mxu0 0.0
        %977 = vmatprep.subr.mxu0 0.0
        %978 = vmatpush1.msra.mxu0 0.0
        %979 = vmatprep.subr.mxu0 0.0
        %980 = vmatpush1.msra.mxu0 0.0
        %981 = vmatprep.subr.mxu0 0.0
        %982 = vmatpush1.msra.mxu0 0.0
        %983 = vmatprep.subr.mxu0 0.0
        %984 = vmatpush1.msra.mxu0 0.0
        %985 = vmatprep.subr.mxu0 0.0
        %986 = vmatpush1.msra.mxu0 0.0
        %987 = vmatprep.subr.mxu0 0.0
        %988 = vmatpush1.msra.mxu0 0.0
        %989 = vmatprep.subr.mxu0 0.0
        %990 = vmatpush1.msra.mxu0 0.0
        %991 = vmatprep.subr.mxu0 0.0
        %992 = vmatpush1.msra.mxu0 0.0
        %993 = vmatprep.subr.mxu0 0.0
        %994 = vmatpush1.msra.mxu0 0.0
        %995 = vmatprep.subr.mxu0 0.0
        %996 = vmatpush1.msra.mxu0 0.0
        %997 = vmatprep.subr.mxu0 0.0
        %998 = vmatpush1.msra.mxu0 0.0
        %999 = vmatprep.subr.mxu0 0.0
        %1000 = vmatpush1.msra.mxu0 0.0
        %1001 = vmatprep.subr.mxu0 0.0
        %1002 = vmatpush1.msra.mxu0 0.0
        %1003 = vmatprep.subr.mxu0 0.0
        %1004 = vmatpush1.msra.mxu0 0.0
        %1005 = vmatprep.subr.mxu0 0.0
        %1006 = vmatpush1.msra.mxu0 0.0
        %1007 = vmatprep.subr.mxu0 0.0
        %1008 = vmatpush1.msra.mxu0 0.0
        %1009 = vmatprep.subr.mxu0 0.0
        %1010 = vmatpush1.msra.mxu0 0.0
        %1011 = vmatprep.subr.mxu0 0.0
        %1012 = vmatpush1.msra.mxu0 0.0
        %1013 = vmatprep.subr.mxu0 0.0
        %1014 = vmatpush1.msra.mxu0 0.0
        %1015 = vmatprep.subr.mxu0 0.0
        %1016 = vmatpush1.msra.mxu0 0.0
        %1017 = vmatprep.mubr.f32.mxu0 0.0
        %1018 = vmatmul.mubr.f32.gmra.mrb[0].mxu0 %v951
        %v1019 = vpop.f32.mrb[0].mxu0
        %v1020 = vadd.f32 0.0, %v1019
        %v1021 = vpop.f32.mrb[0].mxu0
        %1022 = vdwg.mxu0
        %v1023 = vmul.f32 %v1020, %v949
        %1024 = vrot.lane.b32.xlu0 %v855, 120
        %v1025 = vpop.permute.xlu0 %1024
        %1026 = vrot.lane.b32.xlu0 %v771, 120
        %v1027 = vpop.permute.xlu0 %1026
        %v1028 = vsel %vm863, %v1025, 0
        %v1030 = vsel %vm863, %v1027, 0
        %1032 = vmatprep.subr.mxu0 0.0
        %1033 = vmatpush1.xpose.msra.mxu0 %v1030
        %1034 = vmatprep.subr.mxu0 0.0
        %1035 = vmatpush1.xpose.msra.mxu0 0.0
        %1036 = vmatprep.subr.mxu0 0.0
        %1037 = vmatpush1.xpose.msra.mxu0 0.0
        %1038 = vmatprep.subr.mxu0 0.0
        %1039 = vmatpush1.xpose.msra.mxu0 0.0
        %1040 = vmatprep.subr.mxu0 0.0
        %1041 = vmatpush1.xpose.msra.mxu0 0.0
        %1042 = vmatprep.subr.mxu0 0.0
        %1043 = vmatpush1.xpose.msra.mxu0 0.0
        %1044 = vmatprep.subr.mxu0 0.0
        %1045 = vmatpush1.xpose.msra.mxu0 0.0
        %1046 = vmatprep.subr.mxu0 0.0
        %1047 = vmatpush1.xpose.msra.mxu0 0.0
        %1048 = vmatprep.subr.mxu0 0.0
        %1049 = vmatpush1.xpose.msra.mxu0 0.0
        %1050 = vmatprep.subr.mxu0 0.0
        %1051 = vmatpush1.xpose.msra.mxu0 0.0
        %1052 = vmatprep.subr.mxu0 0.0
        %1053 = vmatpush1.xpose.msra.mxu0 0.0
        %1054 = vmatprep.subr.mxu0 0.0
        %1055 = vmatpush1.xpose.msra.mxu0 0.0
        %1056 = vmatprep.subr.mxu0 0.0
        %1057 = vmatpush1.xpose.msra.mxu0 0.0
        %1058 = vmatprep.subr.mxu0 0.0
        %1059 = vmatpush1.xpose.msra.mxu0 0.0
        %1060 = vmatprep.subr.mxu0 0.0
        %1061 = vmatpush1.xpose.msra.mxu0 0.0
        %1062 = vmatprep.subr.mxu0 0.0
        %1063 = vmatpush1.xpose.msra.mxu0 0.0
        %1064 = vmatprep.subr.mxu0 0.0
        %1065 = vmatpush1.xpose.msra.mxu0 0.0
        %1066 = vmatprep.subr.mxu0 0.0
        %1067 = vmatpush1.xpose.msra.mxu0 0.0
        %1068 = vmatprep.subr.mxu0 0.0
        %1069 = vmatpush1.xpose.msra.mxu0 0.0
        %1070 = vmatprep.subr.mxu0 0.0
        %1071 = vmatpush1.xpose.msra.mxu0 0.0
        %1072 = vmatprep.subr.mxu0 0.0
        %1073 = vmatpush1.xpose.msra.mxu0 0.0
        %1074 = vmatprep.subr.mxu0 0.0
        %1075 = vmatpush1.xpose.msra.mxu0 0.0
        %1076 = vmatprep.subr.mxu0 0.0
        %1077 = vmatpush1.xpose.msra.mxu0 0.0
        %1078 = vmatprep.subr.mxu0 0.0
        %1079 = vmatpush1.xpose.msra.mxu0 0.0
        %1080 = vmatprep.subr.mxu0 0.0
        %1081 = vmatpush1.xpose.msra.mxu0 0.0
        %1082 = vmatprep.subr.mxu0 0.0
        %1083 = vmatpush1.xpose.msra.mxu0 0.0
        %1084 = vmatprep.subr.mxu0 0.0
        %1085 = vmatpush1.xpose.msra.mxu0 0.0
        %1086 = vmatprep.subr.mxu0 0.0
        %1087 = vmatpush1.xpose.msra.mxu0 0.0
        %1088 = vmatprep.subr.mxu0 0.0
        %1089 = vmatpush1.xpose.msra.mxu0 0.0
        %1090 = vmatprep.subr.mxu0 0.0
        %1091 = vmatpush1.xpose.msra.mxu0 0.0
        %1092 = vmatprep.subr.mxu0 0.0
        %1093 = vmatpush1.xpose.msra.mxu0 0.0
        %1094 = vmatprep.subr.mxu0 0.0
        %1095 = vmatpush1.xpose.msra.mxu0 0.0
        %1096 = vmatprep.mubr.f32.mxu0 0.0
        %1097 = vmatmul.mubr.f32.gmra.mrb[0].mxu0 %v1028
        %v1098 = vpop.f32.mrb[0].mxu0
        %v1099 = vadd.f32 %v858, %v1098
        %v1100 = vpop.f32.mrb[0].mxu0
        %1101 = vdwg.mxu0
        %v1102 = vsel %vm863, %v1099, -inf
        %1103 = vmax.xlane.f32.xlu0 %v1102
        %v1104 = vpop.xlane.xlu0 %1103
        %v1105 = vsub.f32 %v1099, %v1104
        %v1106 = vmul.f32 %v1105, 1.442695
        %v1107 = vpow.pop %v1106
        %v1108 = vsel %vm863, %v1107, 0.0
        %1109 = vadd.xlane.f32.xlu0 %v1108
        %v1110 = vpop.xlane.xlu0 %1109
        %v1111 = vrcp.pop %v1110
        %1113 = vrot.lane.b32.xlu0 %v852, 120
        %v1114 = vpop.permute.xlu0 %1113
        %v1117 = vsel %vm863, %v1107, 0
        %1119 = vmatprep.subr.mxu0 0.0
        %1120 = vmatpush1.msra.mxu0 %v1114
        %1121 = vmatprep.subr.mxu0 0.0
        %1122 = vmatpush1.msra.mxu0 0.0
        %1123 = vmatprep.subr.mxu0 0.0
        %1124 = vmatpush1.msra.mxu0 0.0
        %1125 = vmatprep.subr.mxu0 0.0
        %1126 = vmatpush1.msra.mxu0 0.0
        %1127 = vmatprep.subr.mxu0 0.0
        %1128 = vmatpush1.msra.mxu0 0.0
        %1129 = vmatprep.subr.mxu0 0.0
        %1130 = vmatpush1.msra.mxu0 0.0
        %1131 = vmatprep.subr.mxu0 0.0
        %1132 = vmatpush1.msra.mxu0 0.0
        %1133 = vmatprep.subr.mxu0 0.0
        %1134 = vmatpush1.msra.mxu0 0.0
        %1135 = vmatprep.subr.mxu0 0.0
        %1136 = vmatpush1.msra.mxu0 0.0
        %1137 = vmatprep.subr.mxu0 0.0
        %1138 = vmatpush1.msra.mxu0 0.0
        %1139 = vmatprep.subr.mxu0 0.0
        %1140 = vmatpush1.msra.mxu0 0.0
        %1141 = vmatprep.subr.mxu0 0.0
        %1142 = vmatpush1.msra.mxu0 0.0
        %1143 = vmatprep.subr.mxu0 0.0
        %1144 = vmatpush1.msra.mxu0 0.0
        %1145 = vmatprep.subr.mxu0 0.0
        %1146 = vmatpush1.msra.mxu0 0.0
        %1147 = vmatprep.subr.mxu0 0.0
        %1148 = vmatpush1.msra.mxu0 0.0
        %1149 = vmatprep.subr.mxu0 0.0
        %1150 = vmatpush1.msra.mxu0 0.0
        %1151 = vmatprep.subr.mxu0 0.0
        %1152 = vmatpush1.msra.mxu0 0.0
        %1153 = vmatprep.subr.mxu0 0.0
        %1154 = vmatpush1.msra.mxu0 0.0
        %1155 = vmatprep.subr.mxu0 0.0
        %1156 = vmatpush1.msra.mxu0 0.0
        %1157 = vmatprep.subr.mxu0 0.0
        %1158 = vmatpush1.msra.mxu0 0.0
        %1159 = vmatprep.subr.mxu0 0.0
        %1160 = vmatpush1.msra.mxu0 0.0
        %1161 = vmatprep.subr.mxu0 0.0
        %1162 = vmatpush1.msra.mxu0 0.0
        %1163 = vmatprep.subr.mxu0 0.0
        %1164 = vmatpush1.msra.mxu0 0.0
        %1165 = vmatprep.subr.mxu0 0.0
        %1166 = vmatpush1.msra.mxu0 0.0
        %1167 = vmatprep.subr.mxu0 0.0
        %1168 = vmatpush1.msra.mxu0 0.0
        %1169 = vmatprep.subr.mxu0 0.0
        %1170 = vmatpush1.msra.mxu0 0.0
        %1171 = vmatprep.subr.mxu0 0.0
        %1172 = vmatpush1.msra.mxu0 0.0
        %1173 = vmatprep.subr.mxu0 0.0
        %1174 = vmatpush1.msra.mxu0 0.0
        %1175 = vmatprep.subr.mxu0 0.0
        %1176 = vmatpush1.msra.mxu0 0.0
        %1177 = vmatprep.subr.mxu0 0.0
        %1178 = vmatpush1.msra.mxu0 0.0
        %1179 = vmatprep.subr.mxu0 0.0
        %1180 = vmatpush1.msra.mxu0 0.0
        %1181 = vmatprep.subr.mxu0 0.0
        %1182 = vmatpush1.msra.mxu0 0.0
        %1183 = vmatprep.mubr.f32.mxu0 0.0
        %1184 = vmatmul.mubr.f32.gmra.mrb[0].mxu0 %v1117
        %v1185 = vpop.f32.mrb[0].mxu0
        %v1186 = vadd.f32 0.0, %v1185
        %v1187 = vpop.f32.mrb[0].mxu0
        %1188 = vdwg.mxu0
        %v1189 = vmul.f32 %v1186, %v1111
        %v1191 = vsel %vm863, %v1189, 0
        %1193 = vmatprep.subr.mxu0 0.0
        %1194 = vmatpush1.msra.mxu0 %v860
        %1195 = vmatprep.subr.mxu0 0.0
        %1196 = vmatpush1.msra.mxu0 0.0
        %1197 = vmatprep.subr.mxu0 0.0
        %1198 = vmatpush1.msra.mxu0 0.0
        %1199 = vmatprep.subr.mxu0 0.0
        %1200 = vmatpush1.msra.mxu0 0.0
        %1201 = vmatprep.subr.mxu0 0.0
        %1202 = vmatpush1.msra.mxu0 0.0
        %1203 = vmatprep.subr.mxu0 0.0
        %1204 = vmatpush1.msra.mxu0 0.0
        %1205 = vmatprep.subr.mxu0 0.0
        %1206 = vmatpush1.msra.mxu0 0.0
        %1207 = vmatprep.subr.mxu0 0.0
        %1208 = vmatpush1.msra.mxu0 0.0
        %1209 = vmatprep.subr.mxu0 0.0
        %1210 = vmatpush1.msra.mxu0 0.0
        %1211 = vmatprep.subr.mxu0 0.0
        %1212 = vmatpush1.msra.mxu0 0.0
        %1213 = vmatprep.subr.mxu0 0.0
        %1214 = vmatpush1.msra.mxu0 0.0
        %1215 = vmatprep.subr.mxu0 0.0
        %1216 = vmatpush1.msra.mxu0 0.0
        %1217 = vmatprep.subr.mxu0 0.0
        %1218 = vmatpush1.msra.mxu0 0.0
        %1219 = vmatprep.subr.mxu0 0.0
        %1220 = vmatpush1.msra.mxu0 0.0
        %1221 = vmatprep.subr.mxu0 0.0
        %1222 = vmatpush1.msra.mxu0 0.0
        %1223 = vmatprep.subr.mxu0 0.0
        %1224 = vmatpush1.msra.mxu0 0.0
        %1225 = vmatprep.subr.mxu0 0.0
        %1226 = vmatpush1.msra.mxu0 0.0
        %1227 = vmatprep.subr.mxu0 0.0
        %1228 = vmatpush1.msra.mxu0 0.0
        %1229 = vmatprep.subr.mxu0 0.0
        %1230 = vmatpush1.msra.mxu0 0.0
        %1231 = vmatprep.subr.mxu0 0.0
        %1232 = vmatpush1.msra.mxu0 0.0
        %1233 = vmatprep.subr.mxu0 0.0
        %1234 = vmatpush1.msra.mxu0 0.0
        %1235 = vmatprep.subr.mxu0 0.0
        %1236 = vmatpush1.msra.mxu0 0.0
        %1237 = vmatprep.subr.mxu0 0.0
        %1238 = vmatpush1.msra.mxu0 0.0
        %1239 = vmatprep.subr.mxu0 0.0
        %1240 = vmatpush1.msra.mxu0 0.0
        %1241 = vmatprep.subr.mxu0 0.0
        %1242 = vmatpush1.msra.mxu0 0.0
        %1243 = vmatprep.subr.mxu0 0.0
        %1244 = vmatpush1.msra.mxu0 0.0
        %1245 = vmatprep.subr.mxu0 0.0
        %1246 = vmatpush1.msra.mxu0 0.0
        %1247 = vmatprep.subr.mxu0 0.0
        %1248 = vmatpush1.msra.mxu0 0.0
        %1249 = vmatprep.subr.mxu0 0.0
        %1250 = vmatpush1.msra.mxu0 0.0
        %1251 = vmatprep.subr.mxu0 0.0
        %1252 = vmatpush1.msra.mxu0 0.0
        %1253 = vmatprep.subr.mxu0 0.0
        %1254 = vmatpush1.msra.mxu0 0.0
        %1255 = vmatprep.subr.mxu0 0.0
        %1256 = vmatpush1.msra.mxu0 0.0
        %1257 = vmatprep.mubr.f32.mxu0 0.0
        %1258 = vmatmul.mubr.f32.gmra.mrb[0].mxu0 %v1191
        %v1259 = vpop.f32.mrb[0].mxu0
        %v1260 = vadd.f32 0.0, %v1259
        %v1261 = vpop.f32.mrb[0].mxu0
        %1262 = vdwg.mxu0
        %v1264 = vsel %vm863, %v1023, 0
        %1266 = vmatprep.subr.mxu0 0.0
        %1267 = vmatpush1.msra.mxu0 %v859
        %1268 = vmatprep.subr.mxu0 0.0
        %1269 = vmatpush1.msra.mxu0 0.0
        %1270 = vmatprep.subr.mxu0 0.0
        %1271 = vmatpush1.msra.mxu0 0.0
        %1272 = vmatprep.subr.mxu0 0.0
        %1273 = vmatpush1.msra.mxu0 0.0
        %1274 = vmatprep.subr.mxu0 0.0
        %1275 = vmatpush1.msra.mxu0 0.0
        %1276 = vmatprep.subr.mxu0 0.0
        %1277 = vmatpush1.msra.mxu0 0.0
        %1278 = vmatprep.subr.mxu0 0.0
        %1279 = vmatpush1.msra.mxu0 0.0
        %1280 = vmatprep.subr.mxu0 0.0
        %1281 = vmatpush1.msra.mxu0 0.0
        %1282 = vmatprep.subr.mxu0 0.0
        %1283 = vmatpush1.msra.mxu0 0.0
        %1284 = vmatprep.subr.mxu0 0.0
        %1285 = vmatpush1.msra.mxu0 0.0
        %1286 = vmatprep.subr.mxu0 0.0
        %1287 = vmatpush1.msra.mxu0 0.0
        %1288 = vmatprep.subr.mxu0 0.0
        %1289 = vmatpush1.msra.mxu0 0.0
        %1290 = vmatprep.subr.mxu0 0.0
        %1291 = vmatpush1.msra.mxu0 0.0
        %1292 = vmatprep.subr.mxu0 0.0
        %1293 = vmatpush1.msra.mxu0 0.0
        %1294 = vmatprep.subr.mxu0 0.0
        %1295 = vmatpush1.msra.mxu0 0.0
        %1296 = vmatprep.subr.mxu0 0.0
        %1297 = vmatpush1.msra.mxu0 0.0
        %1298 = vmatprep.subr.mxu0 0.0
        %1299 = vmatpush1.msra.mxu0 0.0
        %1300 = vmatprep.subr.mxu0 0.0
        %1301 = vmatpush1.msra.mxu0 0.0
        %1302 = vmatprep.subr.mxu0 0.0
        %1303 = vmatpush1.msra.mxu0 0.0
        %1304 = vmatprep.subr.mxu0 0.0
        %1305 = vmatpush1.msra.mxu0 0.0
        %1306 = vmatprep.subr.mxu0 0.0
        %1307 = vmatpush1.msra.mxu0 0.0
        %1308 = vmatprep.subr.mxu0 0.0
        %1309 = vmatpush1.msra.mxu0 0.0
        %1310 = vmatprep.subr.mxu0 0.0
        %1311 = vmatpush1.msra.mxu0 0.0
        %1312 = vmatprep.subr.mxu0 0.0
        %1313 = vmatpush1.msra.mxu0 0.0
        %1314 = vmatprep.subr.mxu0 0.0
        %1315 = vmatpush1.msra.mxu0 0.0
        %1316 = vmatprep.subr.mxu0 0.0
        %1317 = vmatpush1.msra.mxu0 0.0
        %1318 = vmatprep.subr.mxu0 0.0
        %1319 = vmatpush1.msra.mxu0 0.0
        %1320 = vmatprep.subr.mxu0 0.0
        %1321 = vmatpush1.msra.mxu0 0.0
        %1322 = vmatprep.subr.mxu0 0.0
        %1323 = vmatpush1.msra.mxu0 0.0
        %1324 = vmatprep.subr.mxu0 0.0
        %1325 = vmatpush1.msra.mxu0 0.0
        %1326 = vmatprep.subr.mxu0 0.0
        %1327 = vmatpush1.msra.mxu0 0.0
        %1328 = vmatprep.subr.mxu0 0.0
        %1329 = vmatpush1.msra.mxu0 0.0
        %1330 = vmatprep.mubr.f32.mxu0 0.0
        %1331 = vmatmul.mubr.f32.gmra.mrb[0].mxu0 %v1264
        %v1332 = vpop.f32.mrb[0].mxu0
        %v1333 = vadd.f32 %v1260, %v1332
        %v1334 = vpop.f32.mrb[0].mxu0
        %1335 = vdwg.mxu0
        %1336 = vrot.lane.b32.xlu0 %v855, 112
        %v1337 = vpop.permute.xlu0 %1336
        %1338 = vrot.lane.b32.xlu0 %v771, 112
        %v1339 = vpop.permute.xlu0 %1338
        %v1340 = vsel %vm863, %v1337, 0
        %v1342 = vsel %vm863, %v1339, 0
        %1344 = vmatprep.subr.mxu0 0.0
        %1345 = vmatpush1.xpose.msra.mxu0 %v1342
        %1346 = vmatprep.subr.mxu0 0.0
        %1347 = vmatpush1.xpose.msra.mxu0 0.0
        %1348 = vmatprep.subr.mxu0 0.0
        %1349 = vmatpush1.xpose.msra.mxu0 0.0
        %1350 = vmatprep.subr.mxu0 0.0
        %1351 = vmatpush1.xpose.msra.mxu0 0.0
        %1352 = vmatprep.subr.mxu0 0.0
        %1353 = vmatpush1.xpose.msra.mxu0 0.0
        %1354 = vmatprep.subr.mxu0 0.0
        %1355 = vmatpush1.xpose.msra.mxu0 0.0
        %1356 = vmatprep.subr.mxu0 0.0
        %1357 = vmatpush1.xpose.msra.mxu0 0.0
        %1358 = vmatprep.subr.mxu0 0.0
        %1359 = vmatpush1.xpose.msra.mxu0 0.0
        %1360 = vmatprep.subr.mxu0 0.0
        %1361 = vmatpush1.xpose.msra.mxu0 0.0
        %1362 = vmatprep.subr.mxu0 0.0
        %1363 = vmatpush1.xpose.msra.mxu0 0.0
        %1364 = vmatprep.subr.mxu0 0.0
        %1365 = vmatpush1.xpose.msra.mxu0 0.0
        %1366 = vmatprep.subr.mxu0 0.0
        %1367 = vmatpush1.xpose.msra.mxu0 0.0
        %1368 = vmatprep.subr.mxu0 0.0
        %1369 = vmatpush1.xpose.msra.mxu0 0.0
        %1370 = vmatprep.subr.mxu0 0.0
        %1371 = vmatpush1.xpose.msra.mxu0 0.0
        %1372 = vmatprep.subr.mxu0 0.0
        %1373 = vmatpush1.xpose.msra.mxu0 0.0
        %1374 = vmatprep.subr.mxu0 0.0
        %1375 = vmatpush1.xpose.msra.mxu0 0.0
        %1376 = vmatprep.subr.mxu0 0.0
        %1377 = vmatpush1.xpose.msra.mxu0 0.0
        %1378 = vmatprep.subr.mxu0 0.0
        %1379 = vmatpush1.xpose.msra.mxu0 0.0
        %1380 = vmatprep.subr.mxu0 0.0
        %1381 = vmatpush1.xpose.msra.mxu0 0.0
        %1382 = vmatprep.subr.mxu0 0.0
        %1383 = vmatpush1.xpose.msra.mxu0 0.0
        %1384 = vmatprep.subr.mxu0 0.0
        %1385 = vmatpush1.xpose.msra.mxu0 0.0
        %1386 = vmatprep.subr.mxu0 0.0
        %1387 = vmatpush1.xpose.msra.mxu0 0.0
        %1388 = vmatprep.subr.mxu0 0.0
        %1389 = vmatpush1.xpose.msra.mxu0 0.0
        %1390 = vmatprep.subr.mxu0 0.0
        %1391 = vmatpush1.xpose.msra.mxu0 0.0
        %1392 = vmatprep.subr.mxu0 0.0
        %1393 = vmatpush1.xpose.msra.mxu0 0.0
        %1394 = vmatprep.subr.mxu0 0.0
        %1395 = vmatpush1.xpose.msra.mxu0 0.0
        %1396 = vmatprep.subr.mxu0 0.0
        %1397 = vmatpush1.xpose.msra.mxu0 0.0
        %1398 = vmatprep.subr.mxu0 0.0
        %1399 = vmatpush1.xpose.msra.mxu0 0.0
        %1400 = vmatprep.subr.mxu0 0.0
        %1401 = vmatpush1.xpose.msra.mxu0 0.0
        %1402 = vmatprep.subr.mxu0 0.0
        %1403 = vmatpush1.xpose.msra.mxu0 0.0
        %1404 = vmatprep.subr.mxu0 0.0
        %1405 = vmatpush1.xpose.msra.mxu0 0.0
        %1406 = vmatprep.subr.mxu0 0.0
        %1407 = vmatpush1.xpose.msra.mxu0 0.0
        %1408 = vmatprep.mubr.f32.mxu0 0.0
        %1409 = vmatmul.mubr.f32.gmra.mrb[0].mxu0 %v1340
        %v1410 = vpop.f32.mrb[0].mxu0
        %v1411 = vadd.f32 %v858, %v1410
        %v1412 = vpop.f32.mrb[0].mxu0
        %1413 = vdwg.mxu0
        %v1414 = vsel %vm863, %v1411, -inf
        %1415 = vmax.xlane.f32.xlu0 %v1414
        %v1416 = vpop.xlane.xlu0 %1415
        %v1417 = vsub.f32 %v1411, %v1416
        %v1418 = vmul.f32 %v1417, 1.442695
        %v1419 = vpow.pop %v1418
        %v1420 = vsel %vm863, %v1419, 0.0
        %1421 = vadd.xlane.f32.xlu0 %v1420
        %v1422 = vpop.xlane.xlu0 %1421
        %v1423 = vrcp.pop %v1422
        %1424 = vrot.lane.b32.xlu0 %v852, 112
        %v1425 = vpop.permute.xlu0 %1424
        %v1428 = vsel %vm863, %v1419, 0
        %1430 = vmatprep.subr.mxu0 0.0
        %1431 = vmatpush1.msra.mxu0 %v1425
        %1432 = vmatprep.subr.mxu0 0.0
        %1433 = vmatpush1.msra.mxu0 0.0
        %1434 = vmatprep.subr.mxu0 0.0
        %1435 = vmatpush1.msra.mxu0 0.0
        %1436 = vmatprep.subr.mxu0 0.0
        %1437 = vmatpush1.msra.mxu0 0.0
        %1438 = vmatprep.subr.mxu0 0.0
        %1439 = vmatpush1.msra.mxu0 0.0
        %1440 = vmatprep.subr.mxu0 0.0
        %1441 = vmatpush1.msra.mxu0 0.0
        %1442 = vmatprep.subr.mxu0 0.0
        %1443 = vmatpush1.msra.mxu0 0.0
        %1444 = vmatprep.subr.mxu0 0.0
        %1445 = vmatpush1.msra.mxu0 0.0
        %1446 = vmatprep.subr.mxu0 0.0
        %1447 = vmatpush1.msra.mxu0 0.0
        %1448 = vmatprep.subr.mxu0 0.0
        %1449 = vmatpush1.msra.mxu0 0.0
        %1450 = vmatprep.subr.mxu0 0.0
        %1451 = vmatpush1.msra.mxu0 0.0
        %1452 = vmatprep.subr.mxu0 0.0
        %1453 = vmatpush1.msra.mxu0 0.0
        %1454 = vmatprep.subr.mxu0 0.0
        %1455 = vmatpush1.msra.mxu0 0.0
        %1456 = vmatprep.subr.mxu0 0.0
        %1457 = vmatpush1.msra.mxu0 0.0
        %1458 = vmatprep.subr.mxu0 0.0
        %1459 = vmatpush1.msra.mxu0 0.0
        %1460 = vmatprep.subr.mxu0 0.0
        %1461 = vmatpush1.msra.mxu0 0.0
        %1462 = vmatprep.subr.mxu0 0.0
        %1463 = vmatpush1.msra.mxu0 0.0
        %1464 = vmatprep.subr.mxu0 0.0
        %1465 = vmatpush1.msra.mxu0 0.0
        %1466 = vmatprep.subr.mxu0 0.0
        %1467 = vmatpush1.msra.mxu0 0.0
        %1468 = vmatprep.subr.mxu0 0.0
        %1469 = vmatpush1.msra.mxu0 0.0
        %1470 = vmatprep.subr.mxu0 0.0
        %1471 = vmatpush1.msra.mxu0 0.0
        %1472 = vmatprep.subr.mxu0 0.0
        %1473 = vmatpush1.msra.mxu0 0.0
        %1474 = vmatprep.subr.mxu0 0.0
        %1475 = vmatpush1.msra.mxu0 0.0
        %1476 = vmatprep.subr.mxu0 0.0
        %1477 = vmatpush1.msra.mxu0 0.0
        %1478 = vmatprep.subr.mxu0 0.0
        %1479 = vmatpush1.msra.mxu0 0.0
        %1480 = vmatprep.subr.mxu0 0.0
        %1481 = vmatpush1.msra.mxu0 0.0
        %1482 = vmatprep.subr.mxu0 0.0
        %1483 = vmatpush1.msra.mxu0 0.0
        %1484 = vmatprep.subr.mxu0 0.0
        %1485 = vmatpush1.msra.mxu0 0.0
        %1486 = vmatprep.subr.mxu0 0.0
        %1487 = vmatpush1.msra.mxu0 0.0
        %1488 = vmatprep.subr.mxu0 0.0
        %1489 = vmatpush1.msra.mxu0 0.0
        %1490 = vmatprep.subr.mxu0 0.0
        %1491 = vmatpush1.msra.mxu0 0.0
        %1492 = vmatprep.subr.mxu0 0.0
        %1493 = vmatpush1.msra.mxu0 0.0
        %1494 = vmatprep.mubr.f32.mxu0 0.0
        %1495 = vmatmul.mubr.f32.gmra.mrb[0].mxu0 %v1428
        %v1496 = vpop.f32.mrb[0].mxu0
        %v1497 = vadd.f32 0.0, %v1496
        %v1498 = vpop.f32.mrb[0].mxu0
        %1499 = vdwg.mxu0
        %v1500 = vmul.f32 %v1497, %v1423
        %v1502 = vsel %vm863, %v1500, 0
        %1504 = vmatprep.subr.mxu0 0.0
        %1505 = vmatpush1.msra.mxu0 %v861
        %1506 = vmatprep.subr.mxu0 0.0
        %1507 = vmatpush1.msra.mxu0 0.0
        %1508 = vmatprep.subr.mxu0 0.0
        %1509 = vmatpush1.msra.mxu0 0.0
        %1510 = vmatprep.subr.mxu0 0.0
        %1511 = vmatpush1.msra.mxu0 0.0
        %1512 = vmatprep.subr.mxu0 0.0
        %1513 = vmatpush1.msra.mxu0 0.0
        %1514 = vmatprep.subr.mxu0 0.0
        %1515 = vmatpush1.msra.mxu0 0.0
        %1516 = vmatprep.subr.mxu0 0.0
        %1517 = vmatpush1.msra.mxu0 0.0
        %1518 = vmatprep.subr.mxu0 0.0
        %1519 = vmatpush1.msra.mxu0 0.0
        %1520 = vmatprep.subr.mxu0 0.0
        %1521 = vmatpush1.msra.mxu0 0.0
        %1522 = vmatprep.subr.mxu0 0.0
        %1523 = vmatpush1.msra.mxu0 0.0
        %1524 = vmatprep.subr.mxu0 0.0
        %1525 = vmatpush1.msra.mxu0 0.0
        %1526 = vmatprep.subr.mxu0 0.0
        %1527 = vmatpush1.msra.mxu0 0.0
        %1528 = vmatprep.subr.mxu0 0.0
        %1529 = vmatpush1.msra.mxu0 0.0
        %1530 = vmatprep.subr.mxu0 0.0
        %1531 = vmatpush1.msra.mxu0 0.0
        %1532 = vmatprep.subr.mxu0 0.0
        %1533 = vmatpush1.msra.mxu0 0.0
        %1534 = vmatprep.subr.mxu0 0.0
        %1535 = vmatpush1.msra.mxu0 0.0
        %1536 = vmatprep.subr.mxu0 0.0
        %1537 = vmatpush1.msra.mxu0 0.0
        %1538 = vmatprep.subr.mxu0 0.0
        %1539 = vmatpush1.msra.mxu0 0.0
        %1540 = vmatprep.subr.mxu0 0.0
        %1541 = vmatpush1.msra.mxu0 0.0
        %1542 = vmatprep.subr.mxu0 0.0
        %1543 = vmatpush1.msra.mxu0 0.0
        %1544 = vmatprep.subr.mxu0 0.0
        %1545 = vmatpush1.msra.mxu0 0.0
        %1546 = vmatprep.subr.mxu0 0.0
        %1547 = vmatpush1.msra.mxu0 0.0
        %1548 = vmatprep.subr.mxu0 0.0
        %1549 = vmatpush1.msra.mxu0 0.0
        %1550 = vmatprep.subr.mxu0 0.0
        %1551 = vmatpush1.msra.mxu0 0.0
        %1552 = vmatprep.subr.mxu0 0.0
        %1553 = vmatpush1.msra.mxu0 0.0
        %1554 = vmatprep.subr.mxu0 0.0
        %1555 = vmatpush1.msra.mxu0 0.0
        %1556 = vmatprep.subr.mxu0 0.0
        %1557 = vmatpush1.msra.mxu0 0.0
        %1558 = vmatprep.subr.mxu0 0.0
        %1559 = vmatpush1.msra.mxu0 0.0
        %1560 = vmatprep.subr.mxu0 0.0
        %1561 = vmatpush1.msra.mxu0 0.0
        %1562 = vmatprep.subr.mxu0 0.0
        %1563 = vmatpush1.msra.mxu0 0.0
        %1564 = vmatprep.subr.mxu0 0.0
        %1565 = vmatpush1.msra.mxu0 0.0
        %1566 = vmatprep.subr.mxu0 0.0
        %1567 = vmatpush1.msra.mxu0 0.0
        %1568 = vmatprep.mubr.f32.mxu0 0.0
        %1569 = vmatmul.mubr.f32.gmra.mrb[0].mxu0 %v1502
        %v1570 = vpop.f32.mrb[0].mxu0
        %v1571 = vadd.f32 0.0, %v1570
        %v1572 = vpop.f32.mrb[0].mxu0
        %1573 = vdwg.mxu0
        %v1574 = vadd.f32 %v1333, %v1571
        %1575 = vrot.lane.b32.xlu0 %v855, 104
        %v1576 = vpop.permute.xlu0 %1575
        %1577 = vrot.lane.b32.xlu0 %v771, 104
        %v1578 = vpop.permute.xlu0 %1577
        %v1579 = vsel %vm863, %v1576, 0
        %v1581 = vsel %vm863, %v1578, 0
        %1583 = vmatprep.subr.mxu0 0.0
        %1584 = vmatpush1.xpose.msra.mxu0 %v1581
        %1585 = vmatprep.subr.mxu0 0.0
        %1586 = vmatpush1.xpose.msra.mxu0 0.0
        %1587 = vmatprep.subr.mxu0 0.0
        %1588 = vmatpush1.xpose.msra.mxu0 0.0
        %1589 = vmatprep.subr.mxu0 0.0
        %1590 = vmatpush1.xpose.msra.mxu0 0.0
        %1591 = vmatprep.subr.mxu0 0.0
        %1592 = vmatpush1.xpose.msra.mxu0 0.0
        %1593 = vmatprep.subr.mxu0 0.0
        %1594 = vmatpush1.xpose.msra.mxu0 0.0
        %1595 = vmatprep.subr.mxu0 0.0
        %1596 = vmatpush1.xpose.msra.mxu0 0.0
        %1597 = vmatprep.subr.mxu0 0.0
        %1598 = vmatpush1.xpose.msra.mxu0 0.0
        %1599 = vmatprep.subr.mxu0 0.0
        %1600 = vmatpush1.xpose.msra.mxu0 0.0
        %1601 = vmatprep.subr.mxu0 0.0
        %1602 = vmatpush1.xpose.msra.mxu0 0.0
        %1603 = vmatprep.subr.mxu0 0.0
        %1604 = vmatpush1.xpose.msra.mxu0 0.0
        %1605 = vmatprep.subr.mxu0 0.0
        %1606 = vmatpush1.xpose.msra.mxu0 0.0
        %1607 = vmatprep.subr.mxu0 0.0
        %1608 = vmatpush1.xpose.msra.mxu0 0.0
        %1609 = vmatprep.subr.mxu0 0.0
        %1610 = vmatpush1.xpose.msra.mxu0 0.0
        %1611 = vmatprep.subr.mxu0 0.0
        %1612 = vmatpush1.xpose.msra.mxu0 0.0
        %1613 = vmatprep.subr.mxu0 0.0
        %1614 = vmatpush1.xpose.msra.mxu0 0.0
        %1615 = vmatprep.subr.mxu0 0.0
        %1616 = vmatpush1.xpose.msra.mxu0 0.0
        %1617 = vmatprep.subr.mxu0 0.0
        %1618 = vmatpush1.xpose.msra.mxu0 0.0
        %1619 = vmatprep.subr.mxu0 0.0
        %1620 = vmatpush1.xpose.msra.mxu0 0.0
        %1621 = vmatprep.subr.mxu0 0.0
        %1622 = vmatpush1.xpose.msra.mxu0 0.0
        %1623 = vmatprep.subr.mxu0 0.0
        %1624 = vmatpush1.xpose.msra.mxu0 0.0
        %1625 = vmatprep.subr.mxu0 0.0
        %1626 = vmatpush1.xpose.msra.mxu0 0.0
        %1627 = vmatprep.subr.mxu0 0.0
        %1628 = vmatpush1.xpose.msra.mxu0 0.0
        %1629 = vmatprep.subr.mxu0 0.0
        %1630 = vmatpush1.xpose.msra.mxu0 0.0
        %1631 = vmatprep.subr.mxu0 0.0
        %1632 = vmatpush1.xpose.msra.mxu0 0.0
        %1633 = vmatprep.subr.mxu0 0.0
        %1634 = vmatpush1.xpose.msra.mxu0 0.0
        %1635 = vmatprep.subr.mxu0 0.0
        %1636 = vmatpush1.xpose.msra.mxu0 0.0
        %1637 = vmatprep.subr.mxu0 0.0
        %1638 = vmatpush1.xpose.msra.mxu0 0.0
        %1639 = vmatprep.subr.mxu0 0.0
        %1640 = vmatpush1.xpose.msra.mxu0 0.0
        %1641 = vmatprep.subr.mxu0 0.0
        %1642 = vmatpush1.xpose.msra.mxu0 0.0
        %1643 = vmatprep.subr.mxu0 0.0
        %1644 = vmatpush1.xpose.msra.mxu0 0.0
        %1645 = vmatprep.subr.mxu0 0.0
        %1646 = vmatpush1.xpose.msra.mxu0 0.0
        %1647 = vmatprep.mubr.f32.mxu0 0.0
        %1648 = vmatmul.mubr.f32.gmra.mrb[0].mxu0 %v1579
        %v1649 = vpop.f32.mrb[0].mxu0
        %v1650 = vadd.f32 %v858, %v1649
        %v1651 = vpop.f32.mrb[0].mxu0
        %1652 = vdwg.mxu0
        %v1653 = vsel %vm863, %v1650, -inf
        %1654 = vmax.xlane.f32.xlu0 %v1653
        %v1655 = vpop.xlane.xlu0 %1654
        %v1656 = vsub.f32 %v1650, %v1655
        %v1657 = vmul.f32 %v1656, 1.442695
        %v1658 = vpow.pop %v1657
        %v1659 = vsel %vm863, %v1658, 0.0
        %1660 = vadd.xlane.f32.xlu0 %v1659
        %v1661 = vpop.xlane.xlu0 %1660
        %v1662 = vrcp.pop %v1661
        %1663 = vrot.lane.b32.xlu0 %v852, 104
        %v1664 = vpop.permute.xlu0 %1663
        %v1667 = vsel %vm863, %v1658, 0
        %1669 = vmatprep.subr.mxu0 0.0
        %1670 = vmatpush1.msra.mxu0 %v1664
        %1671 = vmatprep.subr.mxu0 0.0
        %1672 = vmatpush1.msra.mxu0 0.0
        %1673 = vmatprep.subr.mxu0 0.0
        %1674 = vmatpush1.msra.mxu0 0.0
        %1675 = vmatprep.subr.mxu0 0.0
        %1676 = vmatpush1.msra.mxu0 0.0
        %1677 = vmatprep.subr.mxu0 0.0
        %1678 = vmatpush1.msra.mxu0 0.0
        %1679 = vmatprep.subr.mxu0 0.0
        %1680 = vmatpush1.msra.mxu0 0.0
        %1681 = vmatprep.subr.mxu0 0.0
        %1682 = vmatpush1.msra.mxu0 0.0
        %1683 = vmatprep.subr.mxu0 0.0
        %1684 = vmatpush1.msra.mxu0 0.0
        %1685 = vmatprep.subr.mxu0 0.0
        %1686 = vmatpush1.msra.mxu0 0.0
        %1687 = vmatprep.subr.mxu0 0.0
        %1688 = vmatpush1.msra.mxu0 0.0
        %1689 = vmatprep.subr.mxu0 0.0
        %1690 = vmatpush1.msra.mxu0 0.0
        %1691 = vmatprep.subr.mxu0 0.0
        %1692 = vmatpush1.msra.mxu0 0.0
        %1693 = vmatprep.subr.mxu0 0.0
        %1694 = vmatpush1.msra.mxu0 0.0
        %1695 = vmatprep.subr.mxu0 0.0
        %1696 = vmatpush1.msra.mxu0 0.0
        %1697 = vmatprep.subr.mxu0 0.0
        %1698 = vmatpush1.msra.mxu0 0.0
        %1699 = vmatprep.subr.mxu0 0.0
        %1700 = vmatpush1.msra.mxu0 0.0
        %1701 = vmatprep.subr.mxu0 0.0
        %1702 = vmatpush1.msra.mxu0 0.0
        %1703 = vmatprep.subr.mxu0 0.0
        %1704 = vmatpush1.msra.mxu0 0.0
        %1705 = vmatprep.subr.mxu0 0.0
        %1706 = vmatpush1.msra.mxu0 0.0
        %1707 = vmatprep.subr.mxu0 0.0
        %1708 = vmatpush1.msra.mxu0 0.0
        %1709 = vmatprep.subr.mxu0 0.0
        %1710 = vmatpush1.msra.mxu0 0.0
        %1711 = vmatprep.subr.mxu0 0.0
        %1712 = vmatpush1.msra.mxu0 0.0
        %1713 = vmatprep.subr.mxu0 0.0
        %1714 = vmatpush1.msra.mxu0 0.0
        %1715 = vmatprep.subr.mxu0 0.0
        %1716 = vmatpush1.msra.mxu0 0.0
        %1717 = vmatprep.subr.mxu0 0.0
        %1718 = vmatpush1.msra.mxu0 0.0
        %1719 = vmatprep.subr.mxu0 0.0
        %1720 = vmatpush1.msra.mxu0 0.0
        %1721 = vmatprep.subr.mxu0 0.0
        %1722 = vmatpush1.msra.mxu0 0.0
        %1723 = vmatprep.subr.mxu0 0.0
        %1724 = vmatpush1.msra.mxu0 0.0
        %1725 = vmatprep.subr.mxu0 0.0
        %1726 = vmatpush1.msra.mxu0 0.0
        %1727 = vmatprep.subr.mxu0 0.0
        %1728 = vmatpush1.msra.mxu0 0.0
        %1729 = vmatprep.subr.mxu0 0.0
        %1730 = vmatpush1.msra.mxu0 0.0
        %1731 = vmatprep.subr.mxu0 0.0
        %1732 = vmatpush1.msra.mxu0 0.0
        %1733 = vmatprep.mubr.f32.mxu0 0.0
        %1734 = vmatmul.mubr.f32.gmra.mrb[0].mxu0 %v1667
        %v1735 = vpop.f32.mrb[0].mxu0
        %v1736 = vadd.f32 0.0, %v1735
        %v1737 = vpop.f32.mrb[0].mxu0
        %1738 = vdwg.mxu0
        %v1739 = vmul.f32 %v1736, %v1662
        %v1741 = vsel %vm863, %v1739, 0
        %1743 = vmatprep.subr.mxu0 0.0
        %1744 = vmatpush1.msra.mxu0 %v862
        %1745 = vmatprep.subr.mxu0 0.0
        %1746 = vmatpush1.msra.mxu0 0.0
        %1747 = vmatprep.subr.mxu0 0.0
        %1748 = vmatpush1.msra.mxu0 0.0
        %1749 = vmatprep.subr.mxu0 0.0
        %1750 = vmatpush1.msra.mxu0 0.0
        %1751 = vmatprep.subr.mxu0 0.0
        %1752 = vmatpush1.msra.mxu0 0.0
        %1753 = vmatprep.subr.mxu0 0.0
        %1754 = vmatpush1.msra.mxu0 0.0
        %1755 = vmatprep.subr.mxu0 0.0
        %1756 = vmatpush1.msra.mxu0 0.0
        %1757 = vmatprep.subr.mxu0 0.0
        %1758 = vmatpush1.msra.mxu0 0.0
        %1759 = vmatprep.subr.mxu0 0.0
        %1760 = vmatpush1.msra.mxu0 0.0
        %1761 = vmatprep.subr.mxu0 0.0
        %1762 = vmatpush1.msra.mxu0 0.0
        %1763 = vmatprep.subr.mxu0 0.0
        %1764 = vmatpush1.msra.mxu0 0.0
        %1765 = vmatprep.subr.mxu0 0.0
        %1766 = vmatpush1.msra.mxu0 0.0
        %1767 = vmatprep.subr.mxu0 0.0
        %1768 = vmatpush1.msra.mxu0 0.0
        %1769 = vmatprep.subr.mxu0 0.0
        %1770 = vmatpush1.msra.mxu0 0.0
        %1771 = vmatprep.subr.mxu0 0.0
        %1772 = vmatpush1.msra.mxu0 0.0
        %1773 = vmatprep.subr.mxu0 0.0
        %1774 = vmatpush1.msra.mxu0 0.0
        %1775 = vmatprep.subr.mxu0 0.0
        %1776 = vmatpush1.msra.mxu0 0.0
        %1777 = vmatprep.subr.mxu0 0.0
        %1778 = vmatpush1.msra.mxu0 0.0
        %1779 = vmatprep.subr.mxu0 0.0
        %1780 = vmatpush1.msra.mxu0 0.0
        %1781 = vmatprep.subr.mxu0 0.0
        %1782 = vmatpush1.msra.mxu0 0.0
        %1783 = vmatprep.subr.mxu0 0.0
        %1784 = vmatpush1.msra.mxu0 0.0
        %1785 = vmatprep.subr.mxu0 0.0
        %1786 = vmatpush1.msra.mxu0 0.0
        %1787 = vmatprep.subr.mxu0 0.0
        %1788 = vmatpush1.msra.mxu0 0.0
        %1789 = vmatprep.subr.mxu0 0.0
        %1790 = vmatpush1.msra.mxu0 0.0
        %1791 = vmatprep.subr.mxu0 0.0
        %1792 = vmatpush1.msra.mxu0 0.0
        %1793 = vmatprep.subr.mxu0 0.0
        %1794 = vmatpush1.msra.mxu0 0.0
        %1795 = vmatprep.subr.mxu0 0.0
        %1796 = vmatpush1.msra.mxu0 0.0
        %1797 = vmatprep.subr.mxu0 0.0
        %1798 = vmatpush1.msra.mxu0 0.0
        %1799 = vmatprep.subr.mxu0 0.0
        %1800 = vmatpush1.msra.mxu0 0.0
        %1801 = vmatprep.subr.mxu0 0.0
        %1802 = vmatpush1.msra.mxu0 0.0
        %1803 = vmatprep.subr.mxu0 0.0
        %1804 = vmatpush1.msra.mxu0 0.0
        %1805 = vmatprep.subr.mxu0 0.0
        %1806 = vmatpush1.msra.mxu0 0.0
        %1807 = vmatprep.mubr.f32.mxu0 0.0
        %1808 = vmatmul.mubr.f32.gmra.mrb[0].mxu0 %v1741
        %v1809 = vpop.f32.mrb[0].mxu0
        %v1810 = vadd.f32 0.0, %v1809
        %v1811 = vpop.f32.mrb[0].mxu0
        %1812 = vdwg.mxu0
        %v1813 = vadd.f32 %v1574, %v1810
        %v1814 = vld [vmem:[%s10] sm:$0x1]
        %v1816 = vlaneseq
        %v1817 = vshrl.u32 %v1816, 7
        %v1818 = vsub.s32 0, %v1817
        %v1819 = vrot.slane %v1814, %v1818
        %v1821 = vadd.f32 %v1813, %v1819
        %v1822 = vadd.f32 %v1821, %v603
        %v1823 = vsel %vm616, %v1822, 0.0
        %1824 = vadd.xlane.f32.xlu0 %v1823
        %v1825 = vpop.xlane.xlu0 %1824
        %v1826 = vrcp.pop 32.0
        %v1827 = vmul.f32 %v1825, %v1826
        %v1828 = vsub.f32 %v1822, %v1827
        %v1829 = vmul.f32 %v1828, %v1828
        %v1830 = vsel %vm616, %v1829, 0.0
        %1831 = vadd.xlane.f32.xlu0 %v1830
        %v1832 = vpop.xlane.xlu0 %1831
        %v1833 = vmul.f32 %v1832, %v1826
        %v1834 = vadd.f32 %v1833, 1e-05
        %v1835 = vrsqrt.pop %v1834
        %v1836 = vmul.f32 %v1828, %v1835
        %v1837 = vld [vmem:[%s11] sm:$0x1]
        %v1839 = vlaneseq
        %v1840 = vshrl.u32 %v1839, 7
        %v1841 = vsub.s32 0, %v1840
        %v1842 = vrot.slane %v1837, %v1841
        %v1844 = vmul.f32 %v1836, %v1842
        %v1845 = vld [vmem:[%s12] sm:$0x1]
        %v1847 = vlaneseq
        %v1848 = vshrl.u32 %v1847, 7
        %v1849 = vsub.s32 0, %v1848
        %v1850 = vrot.slane %v1845, %v1849
        %v1852 = vadd.f32 %v1844, %v1850
        %1853 = vst.msk [vmem:[%s602] sm:$0xff] %vm616, %v1852
        %s1854 = sand.u32 %s349, 1
        %s1855 = scalar_lea.sflag [#allocation4], %s1854
        %s1856 = sand.u32 %s349, 1
        %s1857 = smul.addr %s1856, 8
        %s1858 = scalar_lea.vmem [#allocation14], %s1857
        // Predicated region
        $region101: #{tpu_custom_call.1} parent=71 // pred_check
          %p1859 = pneg %p359
        $region102: #{tpu_custom_call.1} parent=71 // pred_check_branch
          %1861 = sbr.rel (%p1859) target = $region104
        $region103: #{tpu_custom_call.1} parent=71 // pred_region
          %s1863 = ssub.s32 128, 128
          %1864 = vsyncadd %s1855, %s1863
          %s1865 = sadd.s32 %s40, %s39
          %s1866 = smul.addr %s1865, 128
          %s1867 = scalar_lea.hbm %s13, %s1866
          %s1869 = sshll.u32 %s1858, 4
          %s1870 = int_to_ptr.vmem [resolvable:$true] %s1869
          %1872 = dma.vmem_to_hbm [thread:$0]  %s1870, 128, %s1867, %s1855
        $region104: #{tpu_custom_call.1} parent=71 // pred_fallthru
          _
      $region72: #{tpu_custom_call.1} parent=5 // pred_fallthru
        _
      %p1873 = scmp.le.s32.totalorder 2, %s30
      // Predicated region
      $region105: #{tpu_custom_call.1} parent=5 // pred_check
        %p1874 = pneg %p1873
      $region106: #{tpu_custom_call.1} parent=5 // pred_check_branch
        %1876 = sbr.rel (%p1874) target = $region108
      $region107: #{tpu_custom_call.1} parent=5 // pred_region
        %s1877 = ssub.s32 %s30, 2
        // Predicated region
        $region109: #{tpu_custom_call.1} parent=107 // pred_check
          %p1878 = pneg %p365
        $region110: #{tpu_custom_call.1} parent=107 // pred_check_branch
          %1880 = sbr.rel (%p1878) target = $region112
        $region111: #{tpu_custom_call.1} parent=107 // pred_region
          %s1881 = sand.u32 %s350, 1
          %s1882 = scalar_lea.sflag [#allocation4], %s1881
          %s1883 = sand.u32 %s350, 1
          %s1884 = smul.addr %s1883, 8
          %s1885 = scalar_lea.vmem [#allocation14], %s1884
          %1886 = dma.done %s1882, 128
        $region112: #{tpu_custom_call.1} parent=107 // pred_fallthru
          _
      $region108: #{tpu_custom_call.1} parent=5 // pred_fallthru
        _
    $region6: #{tpu_custom_call.1} parent=1 // loop_footer
      %s34 = sadd.s32 1, %s30
    $region7: #{tpu_custom_call.1} parent=1 // loop_footer_branch
      %29 = sbr.rel target = $region3
    $region8: #{tpu_custom_call.1} parent=1 // loop_exit
      _
    %1887 = vsyncpa [#allocation3], 1
    %s1888 = scalar_lea.sflag [#allocation3], 1
    %1889 = vsyncpa %s1888, 1
    %1890 = vsyncpa [#allocation6], 1
    %s1891 = scalar_lea.sflag [#allocation6], 1
    %1892 = vsyncpa %s1891, 1
    %1893 = vsyncpa [#allocation9], 1
    %1894 = vsyncpa [#allocation12], 1
    %1895 = vsyncpa [#allocation4], 1
    %s1896 = scalar_lea.sflag [#allocation4], 1
    %1897 = vsyncpa %s1896, 1

</llo_original>
